<compile_context>
chip_gen: v5e
topology: v5e:2x2
jax: 0.10.0
libtpu: 0.0.40
codegen_flags: <defaults>
</compile_context>

<pallas_src>
import functools

import jax
import jax.numpy as jnp
from jax.experimental import pallas as pl
from jax.experimental.pallas import tpu as pltpu

MID = 64            # trunk channels
NUM_CLASSES = 229   # SMPL parameter count
FC_PAD = 256        # lane-dense padded FC width (sliced back to 229 outside)


# ----------------------------- fused Pallas kernel ----------------------------

def _fused_kernel(x_ref, w0_ref, w1_ref, w2_ref, b_ref, wfc_ref, bfc_ref,
                  out_ref, pool_ref, *, hw, tile, needs_mask):
    t = pl.program_id(1)
    n_t = pl.num_programs(1)

    @pl.when(t == 0)
    def _():
        pool_ref[...] = jnp.zeros_like(pool_ref)

    # (C_in, TILE) slab straight out of NCHW; already bf16 (astype is a no-op then).
    x = x_ref[...]
    if x.dtype != jnp.bfloat16:
        x = x.astype(jnp.bfloat16)

    # BN biases, packed along sublanes: rows [0:64)=stem, [64:128)=res1, [128:192)=res2
    b0 = b_ref[0:MID, :]
    b1 = b_ref[MID:2 * MID, :]
    b2 = b_ref[2 * MID:3 * MID, :]

    # stem: BN-folded Conv1x1 + bias + ReLU; store bf16 for next matmul + residual
    h = jnp.maximum(
        jnp.dot(w0_ref[...], x, preferred_element_type=jnp.float32) + b0, 0.0
    ).astype(jnp.bfloat16)                                              # (64, T) bf16

    # reduced-SmplResNet basic block (two BN-folded 1x1 conv, residual add, ReLU)
    h1 = jnp.maximum(
        jnp.dot(w1_ref[...], h, preferred_element_type=jnp.float32) + b1, 0.0
    ).astype(jnp.bfloat16)                                              # (64, T) bf16
    h2 = jnp.maximum(
        jnp.dot(w2_ref[...], h1, preferred_element_type=jnp.float32) + b2
        + h.astype(jnp.float32),
        0.0)                                                            # (64, T) f32

    if needs_mask:
        # last (partial) tile: zero the out-of-range lanes before pooling
        pos = t * tile + jax.lax.broadcasted_iota(jnp.int32, (1, tile), 1)
        h2 = jnp.where(pos < hw, h2, 0.0)

    # lane-partial streaming global-average-pool: (64,128) partials, pure VPU adds.
    acc = pool_ref[...]
    for k in range(tile // 128):
        acc = acc + h2[:, k * 128:(k + 1) * 128]
    pool_ref[...] = acc

    @pl.when(t == n_t - 1)
    def _():
        # single cross-lane reduce + scale + FC, once per batch element
        pooled = jnp.sum(pool_ref[...], axis=1, keepdims=True) * (1.0 / hw)  # (64,1)
        para = jnp.sum(pooled * wfc_ref[...], axis=0, keepdims=True)         # (1,256)
        out_ref[...] = para + bfc_ref[...]


# ----------------------------- wrapper -----------------------------------------

def _pick_spatial_tile(hw, max_tile):
    """Bounded, 128-aligned spatial tile; ragged extents handled by cdiv + mask."""
    assert max_tile % 128 == 0 and max_tile >= 128
    hw_pad = -(-hw // 128) * 128
    return min(max_tile, hw_pad)


def _const_spec(*shape):
    return pl.BlockSpec(shape, lambda b, t: (0,) * len(shape))


def global_predictor_forward(data_nchw, kparams, *, max_tile=4096):
    """INPUT_MODE='iuv': data is already an iuv_map (B, 75, H, W), ideally bf16."""
    B, C, H, W = data_nchw.shape
    HW = H * W
    x = data_nchw.reshape(B, C, HW)      # free reshape; no NCHW->NHWC transpose pass

    tile = _pick_spatial_tile(HW, max_tile)
    n_tiles = pl.cdiv(HW, tile)
    needs_mask = (HW % tile) != 0

    out = pl.pallas_call(
        functools.partial(_fused_kernel, hw=HW, tile=tile, needs_mask=needs_mask),
        out_shape=jax.ShapeDtypeStruct((B, 1, FC_PAD), jnp.float32),
        grid_spec=pltpu.PrefetchScalarGridSpec(
            num_scalar_prefetch=0,
            grid=(B, n_tiles),
            in_specs=[
                pl.BlockSpec((None, C, tile), lambda b, t: (b, 0, t)),  # activations
                _const_spec(MID, C),          # w_stem (BN-folded, bf16)
                _const_spec(MID, MID),        # w_res1 (BN-folded, bf16)
                _const_spec(MID, MID),        # w_res2 (BN-folded, bf16)
                _const_spec(3 * MID, 1),      # packed BN biases (f32)
                _const_spec(MID, FC_PAD),     # w_fc (f32, zero-padded 229->256)
                _const_spec(1, FC_PAD),       # b_fc (f32, zero-padded)
            ],
            out_specs=pl.BlockSpec((None, 1, FC_PAD), lambda b, t: (b, 0, 0)),
            scratch_shapes=[pltpu.VMEM((MID, 128), jnp.float32)],       # pool partials
        ),
        compiler_params=pltpu.CompilerParams(
            # batch axis may shard across TensorCores; the spatial-tile axis carries
            # the pooled-sum reduction so it must stay "arbitrary".
            dimension_semantics=("parallel", "arbitrary")),
    )(x, kparams["w_stem"], kparams["w_res1"], kparams["w_res2"],
      kparams["b_packed"], kparams["w_fc"], kparams["b_fc"])

    para = out.reshape(B, FC_PAD)[:, :NUM_CLASSES]
    return {"visualization": {}, "losses": {}, "para": para}


# ----------------------------- parameters --------------------------------------

def init_params(key, in_channels=75, mid=MID, num_classes=NUM_CLASSES):
    """Raw (unfused) parameters, mirroring the PyTorch module layout."""
    ks = jax.random.split(key, 8)

    def bn_stats(k):
        k1, k2, k3, k4 = jax.random.split(k, 4)
        gamma = 1.0 + 0.1 * jax.random.normal(k1, (mid,), jnp.float32)
        beta = 0.1 * jax.random.normal(k2, (mid,), jnp.float32)
        mean = 0.05 * jax.random.normal(k3, (mid,), jnp.float32)
        var = jax.random.uniform(k4, (mid,), jnp.float32, minval=0.5, maxval=1.5)
        return gamma, beta, mean, var

    return {
        "w_stem": jax.random.normal(ks[0], (mid, in_channels), jnp.float32)
                  / jnp.sqrt(in_channels),
        "bn_stem": bn_stats(ks[1]),
        "w_res1": jax.random.normal(ks[2], (mid, mid), jnp.float32) / jnp.sqrt(mid),
        "bn_res1": bn_stats(ks[3]),
        "w_res2": jax.random.normal(ks[4], (mid, mid), jnp.float32) / jnp.sqrt(mid),
        "bn_res2": bn_stats(ks[5]),
        "w_fc": jax.random.normal(ks[6], (mid, num_classes), jnp.float32)
                / jnp.sqrt(mid),
        "b_fc": 0.01 * jax.random.normal(ks[7], (num_classes,), jnp.float32),
    }


def _fold_bn(gamma, beta, mean, var, eps=1e-5):
    scale = gamma / jnp.sqrt(var + eps)
    bias = beta - mean * scale
    return scale, bias


def prepare_kernel_params(params):
    """Fold BN scales into bf16 conv weights, pack biases, pad FC to 256 lanes."""
    s0, b0 = _fold_bn(*params["bn_stem"])
    s1, b1 = _fold_bn(*params["bn_res1"])
    s2, b2 = _fold_bn(*params["bn_res2"])
    return {
        "w_stem": (params["w_stem"] * s0[:, None]).astype(jnp.bfloat16),
        "w_res1": (params["w_res1"] * s1[:, None]).astype(jnp.bfloat16),
        "w_res2": (params["w_res2"] * s2[:, None]).astype(jnp.bfloat16),
        "b_packed": jnp.concatenate([b0, b1, b2])[:, None].astype(jnp.float32),
        "w_fc": jnp.pad(params["w_fc"], ((0, 0), (0, FC_PAD - NUM_CLASSES))),
        "b_fc": jnp.pad(params["b_fc"], (0, FC_PAD - NUM_CLASSES))[None, :],
    }


# ----------------------------- pure-JAX references ------------------------------

def _reference_forward_folded(data_nchw, kp):
    """Same numeric path as the kernel (folded bf16 weights, bf16 intermediates)."""
    B, C, H, W = data_nchw.shape
    x = data_nchw.reshape(B, C, H * W).astype(jnp.bfloat16)
    bp = kp["b_packed"][:, 0]
    b0 = bp[0:MID][None, :, None]
    b1 = bp[MID:2 * MID][None, :, None]
    b2 = bp[2 * MID:3 * MID][None, :, None]
    dot = functools.partial(jnp.einsum, "oc,bct->bot",
                            preferred_element_type=jnp.float32)
    h = jnp.maximum(dot(kp["w_stem"], x) + b0, 0.0).astype(jnp.bfloat16)
    h1 = jnp.maximum(dot(kp["w_res1"], h) + b1, 0.0).astype(jnp.bfloat16)
    h2 = jnp.maximum(dot(kp["w_res2"], h1) + b2 + h.astype(jnp.float32), 0.0)
    pooled = jnp.mean(h2, axis=2)                                        # (B, 64)
    para = jnp.sum(pooled[:, :, None] * kp["w_fc"][None], axis=1) + kp["b_fc"]
    return para[:, :NUM_CLASSES]


def _reference_forward_unfused(data_nchw, params, eps=1e-5):
    """Full-f32 conv+BN reference (validates the BN-folding algebra)."""
    B, C, H, W = data_nchw.shape
    x = data_nchw.reshape(B, C, H * W).astype(jnp.float32)

    def bn(h, bnp):
        g, bta, mu, var = bnp
        s = g / jnp.sqrt(var + eps)
        return h * s[None, :, None] + (bta - mu * s)[None, :, None]

    dot = functools.partial(jnp.einsum, "oc,bct->bot",
                            precision=jax.lax.Precision.HIGHEST)
    h = jnp.maximum(bn(dot(params["w_stem"], x), params["bn_stem"]), 0.0)
    h1 = jnp.maximum(bn(dot(params["w_res1"], h), params["bn_res1"]), 0.0)
    h2 = jnp.maximum(bn(dot(params["w_res2"], h1), params["bn_res2"]) + h, 0.0)
    pooled = jnp.mean(h2, axis=2)                                        # (B, 64)
    para = (jnp.sum(pooled[:, :, None] * params["w_fc"][None], axis=1)
            + params["b_fc"][None, :])
    return para


# ----------------------------- main ---------------------------------------------

if __name__ == "__main__":
    key = jax.random.PRNGKey(0)
    k_data, k_data2, k_param = jax.random.split(key, 3)

    B, C_in = 2, 75           # INPUT_MODE='iuv' -> 3*25 channels
    params = init_params(k_param, in_channels=C_in)
    kparams = prepare_kernel_params(params)

    # Case 1: ragged spatial extent (28x28 = 784, not a multiple of 128):
    # exercises the cdiv grid, masked last tile and multi-tile streaming pool.
    # The iuv_map producer emits bf16 (no extra XLA cast pass inside the wrapper).
    data = jax.random.uniform(k_data, (B, C_in, 28, 28), jnp.float32).astype(jnp.bfloat16)
    fwd = jax.jit(functools.partial(global_predictor_forward, max_tile=256))
    out = fwd(data, kparams)
    para = jax.block_until_ready(out["para"])
    assert para.shape == (B, NUM_CLASSES), para.shape
    assert para.dtype == jnp.float32

    err_matched = float(jnp.max(jnp.abs(para - _reference_forward_folded(data, kparams))))
    err_unfused = float(jnp.max(jnp.abs(para - _reference_forward_unfused(data, params))))
    assert err_matched < 2e-2, f"kernel vs matched bf16 reference: {err_matched}"
    assert err_unfused < 1e-1, f"kernel vs unfused f32 reference: {err_unfused}"

    # Case 2: evenly divisible extent (32x32, two 512-wide tiles): unmasked path.
    data2 = jax.random.uniform(k_data2, (B, C_in, 32, 32), jnp.float32).astype(jnp.bfloat16)
    fwd2 = jax.jit(functools.partial(global_predictor_forward, max_tile=512))
    para2 = jax.block_until_ready(fwd2(data2, kparams)["para"])
    err2 = float(jnp.max(jnp.abs(para2 - _reference_forward_folded(data2, kparams))))
    assert err2 < 2e-2, f"kernel vs reference (even tiles): {err2}"

    print("KERNEL_OK")
</pallas_src>

<mosaic_0001>
module attributes {stable_mosaic.version = 11 : i64} {
  func.func @_fused_kernel(%arg0: i32, %arg1: i32, %arg2: memref<1x75x256xbf16, #tpu.memory_space<vmem>>, %arg3: memref<64x75xbf16, #tpu.memory_space<vmem>>, %arg4: memref<64x64xbf16, #tpu.memory_space<vmem>>, %arg5: memref<64x64xbf16, #tpu.memory_space<vmem>>, %arg6: memref<192x1xf32, #tpu.memory_space<vmem>>, %arg7: memref<64x256xf32, #tpu.memory_space<vmem>>, %arg8: memref<1x256xf32, #tpu.memory_space<vmem>>, %arg9: memref<1x1x256xf32, #tpu.memory_space<vmem>>, %arg10: memref<64x128xf32, #tpu.memory_space<vmem>>) attributes {dimension_semantics = [#tpu.dimension_semantics<parallel>, #tpu.dimension_semantics<arbitrary>], iteration_bounds = array<i64: 2, 4>, scalar_prefetch = 0 : i64, scratch_operands = 1 : i64, tpu.core_type = #tpu.core_type<tc>, window_params = [{transform_indices = @transform_0, window_bounds = array<i64: 1, 75, 256>}, {pipeline_mode = #tpu.pipeline_mode<synchronous>, transform_indices = @transform_1, window_bounds = array<i64: 64, 75>}, {pipeline_mode = #tpu.pipeline_mode<synchronous>, transform_indices = @transform_2, window_bounds = array<i64: 64, 64>}, {pipeline_mode = #tpu.pipeline_mode<synchronous>, transform_indices = @transform_3, window_bounds = array<i64: 64, 64>}, {pipeline_mode = #tpu.pipeline_mode<synchronous>, transform_indices = @transform_4, window_bounds = array<i64: 192, 1>}, {pipeline_mode = #tpu.pipeline_mode<synchronous>, transform_indices = @transform_5, window_bounds = array<i64: 64, 256>}, {pipeline_mode = #tpu.pipeline_mode<synchronous>, transform_indices = @transform_6, window_bounds = array<i64: 1, 256>}, {transform_indices = @transform_7, window_bounds = array<i64: 1, 1, 256>}]} {
    %c0_i32 = arith.constant 0 : i32
    %0 = arith.cmpi eq, %arg1, %c0_i32 : i32
    %1 = arith.extui %0 : i1 to i32
    %c0_i32_0 = arith.constant 0 : i32
    %2 = arith.cmpi ne, %1, %c0_i32_0 : i32
    scf.if %2 {
      %cst_24 = arith.constant 0.000000e+00 : f32
      %49 = vector.broadcast %cst_24 : f32 to vector<64x128xf32>
      %c0_25 = arith.constant 0 : index
      %c0_26 = arith.constant 0 : index
      %50 = vector.load %arg10[%c0_25, %c0_26] : memref<64x128xf32, #tpu.memory_space<vmem>>, vector<64x128xf32>
      tpu.vector_store %arg10[%c0_25, %c0_26], %49 {strides = array<i32>} : memref<64x128xf32, #tpu.memory_space<vmem>>, vector<64x128xf32>,
    } else {
    }
    %c0 = arith.constant 0 : index
    %c0_1 = arith.constant 0 : index
    %c0_2 = arith.constant 0 : index
    %3 = vector.load %arg2[%c0, %c0_1, %c0_2] : memref<1x75x256xbf16, #tpu.memory_space<vmem>>, vector<1x75x256xbf16>
    %4 = vector.shape_cast %3 : vector<1x75x256xbf16> to vector<75x256xbf16>
    %c0_3 = arith.constant 0 : index
    %c0_4 = arith.constant 0 : index
    %5 = vector.load %arg6[%c0_3, %c0_4] : memref<192x1xf32, #tpu.memory_space<vmem>>, vector<64x1xf32>
    %c64 = arith.constant 64 : index
    %c0_5 = arith.constant 0 : index
    %6 = vector.load %arg6[%c64, %c0_5] : memref<192x1xf32, #tpu.memory_space<vmem>>, vector<64x1xf32>
    %c128 = arith.constant 128 : index
    %c0_6 = arith.constant 0 : index
    %7 = vector.load %arg6[%c128, %c0_6] : memref<192x1xf32, #tpu.memory_space<vmem>>, vector<64x1xf32>
    %c0_7 = arith.constant 0 : index
    %c0_8 = arith.constant 0 : index
    %8 = vector.load %arg3[%c0_7, %c0_8] : memref<64x75xbf16, #tpu.memory_space<vmem>>, vector<64x75xbf16>
    %cst = arith.constant dense<0.000000e+00> : vector<64x256xf32>
    %9 = tpu.matmul %8, %4, %cst {dimension_numbers = #tpu.dot_dimension_numbers<[1], [0], [0], [1], [0, 0, 1, 1], [], []>} : vector<64x75xbf16>, vector<75x256xbf16>, vector<64x256xf32> -> vector<64x256xf32>
    %10 = vector.broadcast %5 : vector<64x1xf32> to vector<64x256xf32>
    %11 = arith.addf %9, %10 : vector<64x256xf32>
    %cst_9 = arith.constant 0.000000e+00 : f32
    %12 = vector.broadcast %cst_9 : f32 to vector<64x256xf32>
    %13 = arith.maximumf %11, %12 : vector<64x256xf32>
    %14 = arith.truncf %13 : vector<64x256xf32> to vector<64x256xbf16>
    %c0_10 = arith.constant 0 : index
    %c0_11 = arith.constant 0 : index
    %15 = vector.load %arg4[%c0_10, %c0_11] : memref<64x64xbf16, #tpu.memory_space<vmem>>, vector<64x64xbf16>
    %cst_12 = arith.constant dense<0.000000e+00> : vector<64x256xf32>
    %16 = tpu.matmul %15, %14, %cst_12 {dimension_numbers = #tpu.dot_dimension_numbers<[1], [0], [0], [1], [0, 0, 1, 1], [], []>} : vector<64x64xbf16>, vector<64x256xbf16>, vector<64x256xf32> -> vector<64x256xf32>
    %17 = vector.broadcast %6 : vector<64x1xf32> to vector<64x256xf32>
    %18 = arith.addf %16, %17 : vector<64x256xf32>
    %cst_13 = arith.constant 0.000000e+00 : f32
    %19 = vector.broadcast %cst_13 : f32 to vector<64x256xf32>
    %20 = arith.maximumf %18, %19 : vector<64x256xf32>
    %21 = arith.truncf %20 : vector<64x256xf32> to vector<64x256xbf16>
    %c0_14 = arith.constant 0 : index
    %c0_15 = arith.constant 0 : index
    %22 = vector.load %arg5[%c0_14, %c0_15] : memref<64x64xbf16, #tpu.memory_space<vmem>>, vector<64x64xbf16>
    %cst_16 = arith.constant dense<0.000000e+00> : vector<64x256xf32>
    %23 = tpu.matmul %22, %21, %cst_16 {dimension_numbers = #tpu.dot_dimension_numbers<[1], [0], [0], [1], [0, 0, 1, 1], [], []>} : vector<64x64xbf16>, vector<64x256xbf16>, vector<64x256xf32> -> vector<64x256xf32>
    %24 = vector.broadcast %7 : vector<64x1xf32> to vector<64x256xf32>
    %25 = arith.addf %23, %24 : vector<64x256xf32>
    %26 = arith.extf %14 : vector<64x256xbf16> to vector<64x256xf32>
    %27 = arith.addf %25, %26 : vector<64x256xf32>
    %cst_17 = arith.constant 0.000000e+00 : f32
    %28 = vector.broadcast %cst_17 : f32 to vector<64x256xf32>
    %29 = arith.maximumf %27, %28 : vector<64x256xf32>
    %c256_i32 = arith.constant 256 : i32
    %30 = arith.muli %arg1, %c256_i32 : i32
    %31 = tpu.iota {dimensions = array<i32: 1>} : vector<1x256xi32>
    %32 = vector.broadcast %30 : i32 to vector<1x256xi32>
    %33 = arith.addi %32, %31 : vector<1x256xi32>
    %c784_i32 = arith.constant 784 : i32
    %34 = vector.broadcast %c784_i32 : i32 to vector<1x256xi32>
    %35 = arith.cmpi slt, %33, %34 : vector<1x256xi32>
    %cst_18 = arith.constant 0.000000e+00 : f32
    %36 = vector.shape_cast %35 : vector<1x256xi1> to vector<1x256xi1>
    %37 = vector.broadcast %36 : vector<1x256xi1> to vector<64x256xi1>
    %38 = vector.broadcast %cst_18 : f32 to vector<64x256xf32>
    %39 = arith.select %37, %29, %38 : vector<64x256xi1>, vector<64x256xf32>
    %c0_19 = arith.constant 0 : index
    %c0_20 = arith.constant 0 : index
    %40 = vector.load %arg10[%c0_19, %c0_20] : memref<64x128xf32, #tpu.memory_space<vmem>>, vector<64x128xf32>
    %41 = vector.extract_strided_slice %39 {offsets = [0, 0], sizes = [64, 128], strides = [1, 1]} : vector<64x256xf32> to vector<64x128xf32>
    %42 = arith.addf %40, %41 : vector<64x128xf32>
    %43 = vector.extract_strided_slice %39 {offsets = [0, 128], sizes = [64, 128], strides = [1, 1]} : vector<64x256xf32> to vector<64x128xf32>
    %44 = arith.addf %42, %43 : vector<64x128xf32>
    %c0_21 = arith.constant 0 : index
    %c0_22 = arith.constant 0 : index
    %45 = vector.load %arg10[%c0_21, %c0_22] : memref<64x128xf32, #tpu.memory_space<vmem>>, vector<64x128xf32>
    tpu.vector_store %arg10[%c0_21, %c0_22], %44 {strides = array<i32>} : memref<64x128xf32, #tpu.memory_space<vmem>>, vector<64x128xf32>,
    %c3_i32 = arith.constant 3 : i32
    %46 = arith.cmpi eq, %arg1, %c3_i32 : i32
    %47 = arith.extui %46 : i1 to i32
    %c0_i32_23 = arith.constant 0 : i32
    %48 = arith.cmpi ne, %47, %c0_i32_23 : i32
    scf.if %48 {
      %c0_24 = arith.constant 0 : index
      %c0_25 = arith.constant 0 : index
      %49 = vector.load %arg10[%c0_24, %c0_25] : memref<64x128xf32, #tpu.memory_space<vmem>>, vector<64x128xf32>
      %cst_26 = arith.constant dense<0.000000e+00> : vector<64xf32>
      %50 = vector.multi_reduction <add>, %49, %cst_26 [1] : vector<64x128xf32> to vector<64xf32>
      %51 = vector.shape_cast %50 : vector<64xf32> to vector<64x1xf32>
      %cst_27 = arith.constant 0.00127551018 : f32
      %52 = vector.broadcast %cst_27 : f32 to vector<64x1xf32>
      %53 = arith.mulf %51, %52 : vector<64x1xf32>
      %c0_28 = arith.constant 0 : index
      %c0_29 = arith.constant 0 : index
      %54 = vector.load %arg7[%c0_28, %c0_29] : memref<64x256xf32, #tpu.memory_space<vmem>>, vector<64x256xf32>
      %55 = vector.broadcast %53 : vector<64x1xf32> to vector<64x256xf32>
      %56 = arith.mulf %55, %54 : vector<64x256xf32>
      %cst_30 = arith.constant dense<0.000000e+00> : vector<256xf32>
      %57 = vector.multi_reduction <add>, %56, %cst_30 [0] : vector<64x256xf32> to vector<256xf32>
      %58 = vector.shape_cast %57 : vector<256xf32> to vector<1x256xf32>
      %c0_31 = arith.constant 0 : index
      %c0_32 = arith.constant 0 : index
      %59 = vector.load %arg8[%c0_31, %c0_32] : memref<1x256xf32, #tpu.memory_space<vmem>>, vector<1x256xf32>
      %60 = arith.addf %58, %59 : vector<1x256xf32>
      %c0_33 = arith.constant 0 : index
      %c0_34 = arith.constant 0 : index
      %c0_35 = arith.constant 0 : index
      %61 = vector.load %arg9[%c0_33, %c0_34, %c0_35] : memref<1x1x256xf32, #tpu.memory_space<vmem>>, vector<1x1x256xf32>
      %62 = vector.shape_cast %61 : vector<1x1x256xf32> to vector<1x256xf32>
      %63 = vector.shape_cast %60 : vector<1x256xf32> to vector<1x1x256xf32>
      tpu.vector_store %arg9[%c0_33, %c0_34, %c0_35], %63 {strides = array<i32>} : memref<1x1x256xf32, #tpu.memory_space<vmem>>, vector<1x1x256xf32>,
    } else {
    }
    return
  }
  func.func @transform_0(%arg0: i32, %arg1: i32) -> (i32, i32, i32) {
    %c0_i32 = arith.constant 0 : i32
    %c0_i32_0 = arith.constant 0 : i32
    return %arg0, %c0_i32, %arg1 : i32, i32, i32
  }
  func.func @transform_1(%arg0: i32, %arg1: i32) -> (i32, i32) {
    %c0_i32 = arith.constant 0 : i32
    %c0_i32_0 = arith.constant 0 : i32
    %c0_i32_1 = arith.constant 0 : i32
    return %c0_i32, %c0_i32_0 : i32, i32
  }
  func.func @transform_2(%arg0: i32, %arg1: i32) -> (i32, i32) {
    %c0_i32 = arith.constant 0 : i32
    %c0_i32_0 = arith.constant 0 : i32
    %c0_i32_1 = arith.constant 0 : i32
    return %c0_i32, %c0_i32_0 : i32, i32
  }
  func.func @transform_3(%arg0: i32, %arg1: i32) -> (i32, i32) {
    %c0_i32 = arith.constant 0 : i32
    %c0_i32_0 = arith.constant 0 : i32
    %c0_i32_1 = arith.constant 0 : i32
    return %c0_i32, %c0_i32_0 : i32, i32
  }
  func.func @transform_4(%arg0: i32, %arg1: i32) -> (i32, i32) {
    %c0_i32 = arith.constant 0 : i32
    %c0_i32_0 = arith.constant 0 : i32
    %c0_i32_1 = arith.constant 0 : i32
    return %c0_i32, %c0_i32_0 : i32, i32
  }
  func.func @transform_5(%arg0: i32, %arg1: i32) -> (i32, i32) {
    %c0_i32 = arith.constant 0 : i32
    %c0_i32_0 = arith.constant 0 : i32
    %c0_i32_1 = arith.constant 0 : i32
    return %c0_i32, %c0_i32_0 : i32, i32
  }
  func.func @transform_6(%arg0: i32, %arg1: i32) -> (i32, i32) {
    %c0_i32 = arith.constant 0 : i32
    %c0_i32_0 = arith.constant 0 : i32
    %c0_i32_1 = arith.constant 0 : i32
    return %c0_i32, %c0_i32_0 : i32, i32
  }
  func.func @transform_7(%arg0: i32, %arg1: i32) -> (i32, i32, i32) {
    %c0_i32 = arith.constant 0 : i32
    %c0_i32_0 = arith.constant 0 : i32
    %c0_i32_1 = arith.constant 0 : i32
    return %arg0, %c0_i32, %c0_i32_0 : i32, i32, i32
  }
}

</mosaic_0001>

<llo_original>
// kernel: global_predictor_forward.1
$region0: #{global_predictor_forward.1}
  #allocation0 [shape = 'u32[]', space=smem, size = 0x4, offset = 0x4, fixed_abs, tag = 'smem constant byte address 0x4 - core index']
  #allocation1 [shape = 'u32[72,128]{1,0:T(1,128)}', space=vmem, size = 0x9000, scoped, tag = 'internal scratch']
  #allocation2 [shape = 'f32[64,128]{1,0:T(8,128)}', space=vmem, size = 0x8000, scoped, tag = 'scratch operand']
  %s0 = inlined_call_operand.vmem [shape: bf16[2,75,784], index: 0, kind: input, shape index: {}]
  %s1 = inlined_call_operand.vmem [shape: bf16[64,75], index: 1, kind: input, shape index: {}]
  %s2 = inlined_call_operand.vmem [shape: bf16[64,64], index: 2, kind: input, shape index: {}]
  %s3 = inlined_call_operand.vmem [shape: bf16[64,64], index: 3, kind: input, shape index: {}]
  %s4 = inlined_call_operand.vmem [shape: f32[192,1], index: 4, kind: input, shape index: {}]
  %s5 = inlined_call_operand.vmem [shape: f32[64,256], index: 5, kind: input, shape index: {}]
  %s6 = inlined_call_operand.vmem [shape: f32[1,256], index: 6, kind: input, shape index: {}]
  %s7 = inlined_call_operand.vmem [shape: f32[2,1,256], index: 7, kind: output, shape index: {}]
  %s8 = sld [smem:[#allocation0]]
  $region135: #{global_predictor_forward.1} parent=0
    _
  %s10 = ssub.s32 1, %s8
  %s11 = scalar_select 0, %s10, %s8
  $region1: #{global_predictor_forward.1} parent=0
    #allocation3 [shape = 'u8[81920]{0}', space=vmem, size = 0x14000, scoped, tag = 'input window, operand 0']
    loop: start=0, step=1, limit=10
    $region2: #{global_predictor_forward.1} parent=1 // loop_pre_header
      _
    $region3: #{global_predictor_forward.1} parent=1 // loop_header
      %s13 = sphi 0, %s17
      %p14 = scmp.ge.s32.totalorder %s13, 10
      %s20 = sphi 0, %s32
      %s21 = sphi 0, %s28
      %s22 = sphi 0, %s20
      %s23 = sphi 0, %s21
      %s24 = sphi 0, %s22
      %s25 = sphi 0, %s23
      %s37 = sphi 0, %s39
      %s40 = sphi 0, %s37
      %s41 = sphi 0, %s40
      %s57 = sphi 0, %s41
      %s61 = sphi 0, %s61
      %s63 = sphi 0, %s61
      %s64 = sphi 0, %s63
      %s78 = sphi 0, %s64
      %s82 = sphi 0, %s82
      %s84 = sphi 0, %s82
      %s85 = sphi 0, %s84
      %s99 = sphi 0, %s85
      %s103 = sphi 0, %s103
      %s105 = sphi 0, %s103
      %s106 = sphi 0, %s105
      %s120 = sphi 0, %s106
      %s124 = sphi 0, %s124
      %s126 = sphi 0, %s124
      %s127 = sphi 0, %s126
      %s141 = sphi 0, %s127
      %s145 = sphi 0, %s145
      %s147 = sphi 0, %s145
      %s148 = sphi 0, %s147
      %s162 = sphi 0, %s148
      %s166 = sphi 0, %s166
      %s168 = sphi 0, %s166
      %s169 = sphi 0, %s168
      %s183 = sphi 0, %s169
      %s189 = sphi 0, %s191
      %s192 = sphi 0, %s189
      %s193 = sphi 0, %s192
      %s209 = sphi 0, %s193
    $region4: #{global_predictor_forward.1} parent=1 // loop_header_branch
      %16 = sbr.rel (%p14) target = $region8
    $region5: #{global_predictor_forward.1} parent=1 // loop_body
      %s18 = ssub.s32 %s13, 1
      %s19 = ssub.s32 %s13, 2
      %s26 = sadd.s32 1, %s21
      %p27 = scmp.ge.s32.totalorder %s26, 4
      %s28 = scalar_select %p27, 0, %s26
      %s29 = sadd.s32 1, %s20
      %s30 = scalar_select %p27, %s29, %s20
      %p31 = scmp.ge.s32.totalorder %s30, 2
      %s32 = scalar_select %p31, 0, %s30
      %s33 = ssub.s32 %s20, %s32
      %s34 = ssub.s32 %s21, %s28
      %s35 = sor.u32 %s33, %s34
      %p36 = scmp.eq.s32.totalorder %s35, 0
      %s38 = sadd.s32 %s37, 1
      %s39 = scalar_select %p36, %s37, %s38
      %p42 = pneg %p36
      %p43 = scmp.eq.s32.totalorder %s13, 7
      %p44 = por %p42, %p43
      %p45 = scmp.ne.s32.totalorder %s37, %s40
      %p46 = scmp.eq.s32.totalorder %s13, 0
      %p47 = por %p45, %p46
      %p48 = scmp.ne.s32.totalorder %s37, %s40
      %p49 = scmp.eq.s32.totalorder %s18, 7
      %p50 = por %p48, %p49
      %p51 = scmp.ne.s32.totalorder %s40, %s41
      %p52 = scmp.eq.s32.totalorder %s18, 0
      %p53 = por %p51, %p52
      %p54 = scmp.ne.s32.totalorder %s40, %s41
      %p55 = scmp.eq.s32.totalorder %s19, 7
      %p56 = por %p54, %p55
      %p58 = scmp.ne.s32.totalorder %s41, %s57
      %p59 = scmp.eq.s32.totalorder %s19, 0
      %p60 = por %p58, %p59
      %s62 = sadd.s32 %s61, 1
      %p65 = scmp.eq.s32.totalorder %s13, 7
      %p66 = scmp.ne.s32.totalorder %s61, %s63
      %p67 = scmp.eq.s32.totalorder %s13, 0
      %p68 = por %p66, %p67
      %p69 = scmp.ne.s32.totalorder %s61, %s63
      %p70 = scmp.eq.s32.totalorder %s18, 7
      %p71 = por %p69, %p70
      %p72 = scmp.ne.s32.totalorder %s63, %s64
      %p73 = scmp.eq.s32.totalorder %s18, 0
      %p74 = por %p72, %p73
      %p75 = scmp.ne.s32.totalorder %s63, %s64
      %p76 = scmp.eq.s32.totalorder %s19, 7
      %p77 = por %p75, %p76
      %p79 = scmp.ne.s32.totalorder %s64, %s78
      %p80 = scmp.eq.s32.totalorder %s19, 0
      %p81 = por %p79, %p80
      %s83 = sadd.s32 %s82, 1
      %p86 = scmp.eq.s32.totalorder %s13, 7
      %p87 = scmp.ne.s32.totalorder %s82, %s84
      %p88 = scmp.eq.s32.totalorder %s13, 0
      %p89 = por %p87, %p88
      %p90 = scmp.ne.s32.totalorder %s82, %s84
      %p91 = scmp.eq.s32.totalorder %s18, 7
      %p92 = por %p90, %p91
      %p93 = scmp.ne.s32.totalorder %s84, %s85
      %p94 = scmp.eq.s32.totalorder %s18, 0
      %p95 = por %p93, %p94
      %p96 = scmp.ne.s32.totalorder %s84, %s85
      %p97 = scmp.eq.s32.totalorder %s19, 7
      %p98 = por %p96, %p97
      %p100 = scmp.ne.s32.totalorder %s85, %s99
      %p101 = scmp.eq.s32.totalorder %s19, 0
      %p102 = por %p100, %p101
      %s104 = sadd.s32 %s103, 1
      %p107 = scmp.eq.s32.totalorder %s13, 7
      %p108 = scmp.ne.s32.totalorder %s103, %s105
      %p109 = scmp.eq.s32.totalorder %s13, 0
      %p110 = por %p108, %p109
      %p111 = scmp.ne.s32.totalorder %s103, %s105
      %p112 = scmp.eq.s32.totalorder %s18, 7
      %p113 = por %p111, %p112
      %p114 = scmp.ne.s32.totalorder %s105, %s106
      %p115 = scmp.eq.s32.totalorder %s18, 0
      %p116 = por %p114, %p115
      %p117 = scmp.ne.s32.totalorder %s105, %s106
      %p118 = scmp.eq.s32.totalorder %s19, 7
      %p119 = por %p117, %p118
      %p121 = scmp.ne.s32.totalorder %s106, %s120
      %p122 = scmp.eq.s32.totalorder %s19, 0
      %p123 = por %p121, %p122
      %s125 = sadd.s32 %s124, 1
      %p128 = scmp.eq.s32.totalorder %s13, 7
      %p129 = scmp.ne.s32.totalorder %s124, %s126
      %p130 = scmp.eq.s32.totalorder %s13, 0
      %p131 = por %p129, %p130
      %p132 = scmp.ne.s32.totalorder %s124, %s126
      %p133 = scmp.eq.s32.totalorder %s18, 7
      %p134 = por %p132, %p133
      %p135 = scmp.ne.s32.totalorder %s126, %s127
      %p136 = scmp.eq.s32.totalorder %s18, 0
      %p137 = por %p135, %p136
      %p138 = scmp.ne.s32.totalorder %s126, %s127
      %p139 = scmp.eq.s32.totalorder %s19, 7
      %p140 = por %p138, %p139
      %p142 = scmp.ne.s32.totalorder %s127, %s141
      %p143 = scmp.eq.s32.totalorder %s19, 0
      %p144 = por %p142, %p143
      %s146 = sadd.s32 %s145, 1
      %p149 = scmp.eq.s32.totalorder %s13, 7
      %p150 = scmp.ne.s32.totalorder %s145, %s147
      %p151 = scmp.eq.s32.totalorder %s13, 0
      %p152 = por %p150, %p151
      %p153 = scmp.ne.s32.totalorder %s145, %s147
      %p154 = scmp.eq.s32.totalorder %s18, 7
      %p155 = por %p153, %p154
      %p156 = scmp.ne.s32.totalorder %s147, %s148
      %p157 = scmp.eq.s32.totalorder %s18, 0
      %p158 = por %p156, %p157
      %p159 = scmp.ne.s32.totalorder %s147, %s148
      %p160 = scmp.eq.s32.totalorder %s19, 7
      %p161 = por %p159, %p160
      %p163 = scmp.ne.s32.totalorder %s148, %s162
      %p164 = scmp.eq.s32.totalorder %s19, 0
      %p165 = por %p163, %p164
      %s167 = sadd.s32 %s166, 1
      %p170 = scmp.eq.s32.totalorder %s13, 7
      %p171 = scmp.ne.s32.totalorder %s166, %s168
      %p172 = scmp.eq.s32.totalorder %s13, 0
      %p173 = por %p171, %p172
      %p174 = scmp.ne.s32.totalorder %s166, %s168
      %p175 = scmp.eq.s32.totalorder %s18, 7
      %p176 = por %p174, %p175
      %p177 = scmp.ne.s32.totalorder %s168, %s169
      %p178 = scmp.eq.s32.totalorder %s18, 0
      %p179 = por %p177, %p178
      %p180 = scmp.ne.s32.totalorder %s168, %s169
      %p181 = scmp.eq.s32.totalorder %s19, 7
      %p182 = por %p180, %p181
      %p184 = scmp.ne.s32.totalorder %s169, %s183
      %p185 = scmp.eq.s32.totalorder %s19, 0
      %p186 = por %p184, %p185
      %s187 = ssub.s32 %s20, %s32
      %p188 = scmp.eq.s32.totalorder %s187, 0
      %s190 = sadd.s32 %s189, 1
      %s191 = scalar_select %p188, %s189, %s190
      %p194 = pneg %p188
      %p195 = scmp.eq.s32.totalorder %s13, 7
      %p196 = por %p194, %p195
      %p197 = scmp.ne.s32.totalorder %s189, %s192
      %p198 = scmp.eq.s32.totalorder %s13, 0
      %p199 = por %p197, %p198
      %p200 = scmp.ne.s32.totalorder %s189, %s192
      %p201 = scmp.eq.s32.totalorder %s18, 7
      %p202 = por %p200, %p201
      %p203 = scmp.ne.s32.totalorder %s192, %s193
      %p204 = scmp.eq.s32.totalorder %s18, 0
      %p205 = por %p203, %p204
      %p206 = scmp.ne.s32.totalorder %s192, %s193
      %p207 = scmp.eq.s32.totalorder %s19, 7
      %p208 = por %p206, %p207
      %p210 = scmp.ne.s32.totalorder %s193, %s209
      %p211 = scmp.eq.s32.totalorder %s19, 0
      %p212 = por %p210, %p211
      %p213 = scmp.le.s32.totalorder 1, %s13
      %p214 = scmp.lt.s32.totalorder %s13, 9
      %p215 = pnand %p213, %p214
      %p216 = pneg %p215
      // Predicated region
      $region9: #{global_predictor_forward.1} parent=5 // pred_check
        _
      $region10: #{global_predictor_forward.1} parent=5 // pred_check_branch
        %218 = sbr.rel (%p215) target = $region12
      $region11: #{global_predictor_forward.1} parent=5 // pred_region
        %s219 = ssub.s32 %s13, 1
        // Predicated region
        $region13: #{global_predictor_forward.1} parent=11 // pred_check
          %p220 = pneg %p74
        $region14: #{global_predictor_forward.1} parent=11 // pred_check_branch
          %222 = sbr.rel (%p220) target = $region16
        $region15: #{global_predictor_forward.1} parent=11 // pred_region
          _
        $region16: #{global_predictor_forward.1} parent=11 // pred_fallthru
          _
        // Predicated region
        $region17: #{global_predictor_forward.1} parent=11 // pred_check
          %p223 = pneg %p95
        $region18: #{global_predictor_forward.1} parent=11 // pred_check_branch
          %225 = sbr.rel (%p223) target = $region20
        $region19: #{global_predictor_forward.1} parent=11 // pred_region
          _
        $region20: #{global_predictor_forward.1} parent=11 // pred_fallthru
          _
        // Predicated region
        $region21: #{global_predictor_forward.1} parent=11 // pred_check
          %p226 = pneg %p116
        $region22: #{global_predictor_forward.1} parent=11 // pred_check_branch
          %228 = sbr.rel (%p226) target = $region24
        $region23: #{global_predictor_forward.1} parent=11 // pred_region
          _
        $region24: #{global_predictor_forward.1} parent=11 // pred_fallthru
          _
        // Predicated region
        $region25: #{global_predictor_forward.1} parent=11 // pred_check
          %p229 = pneg %p137
        $region26: #{global_predictor_forward.1} parent=11 // pred_check_branch
          %231 = sbr.rel (%p229) target = $region28
        $region27: #{global_predictor_forward.1} parent=11 // pred_region
          _
        $region28: #{global_predictor_forward.1} parent=11 // pred_fallthru
          _
        // Predicated region
        $region29: #{global_predictor_forward.1} parent=11 // pred_check
          %p232 = pneg %p158
        $region30: #{global_predictor_forward.1} parent=11 // pred_check_branch
          %234 = sbr.rel (%p232) target = $region32
        $region31: #{global_predictor_forward.1} parent=11 // pred_region
          _
        $region32: #{global_predictor_forward.1} parent=11 // pred_fallthru
          _
        // Predicated region
        $region33: #{global_predictor_forward.1} parent=11 // pred_check
          %p235 = pneg %p179
        $region34: #{global_predictor_forward.1} parent=11 // pred_check_branch
          %237 = sbr.rel (%p235) target = $region36
        $region35: #{global_predictor_forward.1} parent=11 // pred_region
          _
        $region36: #{global_predictor_forward.1} parent=11 // pred_fallthru
          _
      $region12: #{global_predictor_forward.1} parent=5 // pred_fallthru
        _
      %p238 = scmp.lt.s32.totalorder %s13, 8
      // Predicated region
      $region37: #{global_predictor_forward.1} parent=5 // pred_check
        %p239 = pneg %p238
      $region38: #{global_predictor_forward.1} parent=5 // pred_check_branch
        %241 = sbr.rel (%p239) target = $region40
      $region39: #{global_predictor_forward.1} parent=5 // pred_region
        // Predicated region
        $region41: #{global_predictor_forward.1} parent=39 // pred_check
          %p242 = pneg %p47
        $region42: #{global_predictor_forward.1} parent=39 // pred_check_branch
          %244 = sbr.rel (%p242) target = $region44
        $region43: #{global_predictor_forward.1} parent=39 // pred_region
          %s245 = sand.u32 %s37, 1
          %s246 = sand.u32 %s37, 1
          %s247 = smul.addr %s246, 80
          %s248 = scalar_lea.vmem [#allocation3], %s247
          %s249 = smul.u32 2, %s21
          %s250 = ssub.s32 7, %s249
          %p251 = scmp.lt.s32.totalorder %s250, 2
          %s252 = scalar_select %p251, %s250, 2
          %s253 = smul.u32 40, %s252
          %p254 = scmp.ne.s32.totalorder 0, %s253
          %s255 = smul.addr %s20, 70
          %s256 = sadd.s32 %s249, %s255
          %s257 = smul.addr %s256, 4
          %s258 = scalar_lea.vmem %s0, %s257
          %s259 = smul.u32 %s252, 4
          // Predicated region
          $region45: #{global_predictor_forward.1} parent=43 // pred_check
            %p260 = pneg %p254
          $region46: #{global_predictor_forward.1} parent=43 // pred_check_branch
            %262 = sbr.rel (%p260) target = $region48
          $region47: #{global_predictor_forward.1} parent=43 // pred_region
            %p263 = scmp.lt.u32.totalorder %s259, 8
            %p264 = pneg %p263
            // Predicated region
            $region49: #{global_predictor_forward.1} parent=47 // pred_check
              _
            $region50: #{global_predictor_forward.1} parent=47 // pred_check_branch
              %266 = sbr.rel (%p263) target = $region52
            $region51: #{global_predictor_forward.1} parent=47 // pred_region
              %s300 = sand.u32 %s259, 7
              %p301 = scmp.eq.s32.totalorder %s300, 0
              // Predicated region
              $region64: #{global_predictor_forward.1} parent=51 // pred_check
                %p302 = pneg %p301
              $region65: #{global_predictor_forward.1} parent=51 // pred_check_branch
                %304 = sbr.rel (%p302) target = $region67
              $region66: #{global_predictor_forward.1} parent=51 // pred_region
                %s305 = sshrl.u32 %s259, 3
                %s306 = sshrl.u32 %s305, 2
                // While loop
                $region68: #{global_predictor_forward.1} parent=66 // loop_pre_header
                  _
                $region69: #{global_predictor_forward.1} parent=66 // loop_header
                  %s308 = sphi 0, %s310
                  %p309 = scmp.ge.s32.totalorder %s308, %s306
                  %s313 = sphi 0, %s398
                  %s314 = sphi %s258, %s401
                  %s315 = sphi %s248, %s402
                $region70: #{global_predictor_forward.1} parent=66 // loop_header_branch
                  %312 = sbr.rel (%p309) target = $region74
                $region71: #{global_predictor_forward.1} parent=66 // loop_body
                  %v316 = vld [vmem:[%s314] sm:$0xff]
                  %317 = vst [vmem:[%s315] sm:$0xff] %v316
                  %v318 = vld [vmem:[%s314 + $0x8] sm:$0xff]
                  %319 = vst [vmem:[%s315 + $0x8] sm:$0xff] %v318
                  %v320 = vld [vmem:[%s314 + $0x10] sm:$0xff]
                  %321 = vst [vmem:[%s315 + $0x10] sm:$0xff] %v320
                  %v322 = vld [vmem:[%s314 + $0x18] sm:$0xff]
                  %323 = vst [vmem:[%s315 + $0x18] sm:$0xff] %v322
                  %v324 = vld [vmem:[%s314 + $0x1c] sm:$0xff]
                  %325 = vst [vmem:[%s315 + $0x8] sm:$0xff] %v324
                  %v326 = vld [vmem:[%s314 + $0x24] sm:$0xff]
                  %327 = vst [vmem:[%s315 + $0x10] sm:$0xff] %v326
                  %v328 = vld [vmem:[%s314 + $0x2c] sm:$0xff]
                  %329 = vst [vmem:[%s315 + $0x18] sm:$0xff] %v328
                  %v330 = vld [vmem:[%s314 + $0x34] sm:$0xff]
                  %331 = vst [vmem:[%s315 + $0x20] sm:$0xff] %v330
                  %v332 = vld [vmem:[%s314 + $0x38] sm:$0xff]
                  %333 = vst [vmem:[%s315 + $0x10] sm:$0xff] %v332
                  %v334 = vld [vmem:[%s314 + $0x40] sm:$0xff]
                  %335 = vst [vmem:[%s315 + $0x18] sm:$0xff] %v334
                  %v336 = vld [vmem:[%s314 + $0x48] sm:$0xff]
                  %337 = vst [vmem:[%s315 + $0x20] sm:$0xff] %v336
                  %v338 = vld [vmem:[%s314 + $0x50] sm:$0xff]
                  %339 = vst [vmem:[%s315 + $0x28] sm:$0xff] %v338
                  %v340 = vld [vmem:[%s314 + $0x54] sm:$0xff]
                  %341 = vst [vmem:[%s315 + $0x18] sm:$0xff] %v340
                  %v342 = vld [vmem:[%s314 + $0x5c] sm:$0xff]
                  %343 = vst [vmem:[%s315 + $0x20] sm:$0xff] %v342
                  %v344 = vld [vmem:[%s314 + $0x64] sm:$0xff]
                  %345 = vst [vmem:[%s315 + $0x28] sm:$0xff] %v344
                  %v346 = vld [vmem:[%s314 + $0x6c] sm:$0xff]
                  %347 = vst [vmem:[%s315 + $0x30] sm:$0xff] %v346
                  %v348 = vld [vmem:[%s314 + $0x70] sm:$0xff]
                  %349 = vst [vmem:[%s315 + $0x20] sm:$0xff] %v348
                  %v350 = vld [vmem:[%s314 + $0x78] sm:$0xff]
                  %351 = vst [vmem:[%s315 + $0x28] sm:$0xff] %v350
                  %v352 = vld [vmem:[%s314 + $0x80] sm:$0xff]
                  %353 = vst [vmem:[%s315 + $0x30] sm:$0xff] %v352
                  %v354 = vld [vmem:[%s314 + $0x88] sm:$0xff]
                  %355 = vst [vmem:[%s315 + $0x38] sm:$0xff] %v354
                  %v356 = vld [vmem:[%s314 + $0x8c] sm:$0xff]
                  %357 = vst [vmem:[%s315 + $0x28] sm:$0xff] %v356
                  %v358 = vld [vmem:[%s314 + $0x94] sm:$0xff]
                  %359 = vst [vmem:[%s315 + $0x30] sm:$0xff] %v358
                  %v360 = vld [vmem:[%s314 + $0x9c] sm:$0xff]
                  %361 = vst [vmem:[%s315 + $0x38] sm:$0xff] %v360
                  %v362 = vld [vmem:[%s314 + $0xa4] sm:$0xff]
                  %363 = vst [vmem:[%s315 + $0x40] sm:$0xff] %v362
                  %v364 = vld [vmem:[%s314 + $0xa8] sm:$0xff]
                  %365 = vst [vmem:[%s315 + $0x30] sm:$0xff] %v364
                  %v366 = vld [vmem:[%s314 + $0xb0] sm:$0xff]
                  %367 = vst [vmem:[%s315 + $0x38] sm:$0xff] %v366
                  %v368 = vld [vmem:[%s314 + $0xb8] sm:$0xff]
                  %369 = vst [vmem:[%s315 + $0x40] sm:$0xff] %v368
                  %v370 = vld [vmem:[%s314 + $0xc0] sm:$0xff]
                  %371 = vst [vmem:[%s315 + $0x48] sm:$0xff] %v370
                  %v372 = vld [vmem:[%s314 + $0xc4] sm:$0xff]
                  %373 = vst [vmem:[%s315 + $0x38] sm:$0xff] %v372
                  %v374 = vld [vmem:[%s314 + $0xcc] sm:$0xff]
                  %375 = vst [vmem:[%s315 + $0x40] sm:$0xff] %v374
                  %v376 = vld [vmem:[%s314 + $0xd4] sm:$0xff]
                  %377 = vst [vmem:[%s315 + $0x48] sm:$0xff] %v376
                  %v378 = vld [vmem:[%s314 + $0xdc] sm:$0xff]
                  %379 = vst [vmem:[%s315 + $0x50] sm:$0xff] %v378
                  %v380 = vld [vmem:[%s314 + $0xe0] sm:$0xff]
                  %381 = vst [vmem:[%s315 + $0x40] sm:$0xff] %v380
                  %v382 = vld [vmem:[%s314 + $0xe8] sm:$0xff]
                  %383 = vst [vmem:[%s315 + $0x48] sm:$0xff] %v382
                  %v384 = vld [vmem:[%s314 + $0xf0] sm:$0xff]
                  %385 = vst [vmem:[%s315 + $0x50] sm:$0xff] %v384
                  %v386 = vld [vmem:[%s314 + $0xf8] sm:$0xff]
                  %387 = vst [vmem:[%s315 + $0x58] sm:$0xff] %v386
                  %v388 = vld [vmem:[%s314 + $0xfc] sm:$0xff]
                  %389 = vst [vmem:[%s315 + $0x48] sm:$0xff] %v388
                  %v390 = vld [vmem:[%s314 + $0x104] sm:$0xff]
                  %391 = vst [vmem:[%s315 + $0x50] sm:$0xff] %v390
                  %v392 = vld [vmem:[%s314 + $0x10c] sm:$0xff]
                  %393 = vst [vmem:[%s315 + $0x58] sm:$0xff] %v392
                  %v394 = vld [vmem:[%s314 + $0x114] sm:$0xff]
                  %395 = vst [vmem:[%s315 + $0x60] sm:$0xff] %v394
                  %s396 = sadd.s32 1, %s313
                  %p397 = scmp.ge.s32.totalorder %s396, %s306
                  %s398 = scalar_select %p397, 0, %s396
                  %s399 = smul.u32 %s398, 32
                  %s400 = smul.u32 %s398, 32
                  %s401 = scalar_lea.vmem %s258, %s399
                  %s402 = scalar_lea.vmem %s248, %s400 [#allocation3]
                $region72: #{global_predictor_forward.1} parent=66 // loop_footer
                  %s310 = sadd.s32 %s308, 1
                $region73: #{global_predictor_forward.1} parent=66 // loop_footer_branch
                  %307 = sbr.rel target = $region69
                $region74: #{global_predictor_forward.1} parent=66 // loop_exit
                  _
                %s403 = sshrl.u32 %s305, 2
                %s404 = sand.u32 %s305, 3
                %s405 = smul.u32 %s403, 4
                %s406 = smul.u32 8, %s405
                %s407 = scalar_lea.vmem %s258, %s406
                %s408 = smul.u32 8, %s405
                %s409 = scalar_lea.vmem %s248, %s408 [#allocation3]
                // While loop
                $region75: #{global_predictor_forward.1} parent=66 // loop_pre_header
                  _
                $region76: #{global_predictor_forward.1} parent=66 // loop_header
                  %s411 = sphi 0, %s413
                  %p412 = scmp.ge.s32.totalorder %s411, %s404
                  %s416 = sphi 0, %s441
                  %s417 = sphi %s407, %s444
                  %s418 = sphi %s409, %s445
                $region77: #{global_predictor_forward.1} parent=66 // loop_header_branch
                  %415 = sbr.rel (%p412) target = $region81
                $region78: #{global_predictor_forward.1} parent=66 // loop_body
                  %v419 = vld [vmem:[%s417] sm:$0xff]
                  %420 = vst [vmem:[%s418] sm:$0xff] %v419
                  %v421 = vld [vmem:[%s417 + $0x1c] sm:$0xff]
                  %422 = vst [vmem:[%s418 + $0x8] sm:$0xff] %v421
                  %v423 = vld [vmem:[%s417 + $0x38] sm:$0xff]
                  %424 = vst [vmem:[%s418 + $0x10] sm:$0xff] %v423
                  %v425 = vld [vmem:[%s417 + $0x54] sm:$0xff]
                  %426 = vst [vmem:[%s418 + $0x18] sm:$0xff] %v425
                  %v427 = vld [vmem:[%s417 + $0x70] sm:$0xff]
                  %428 = vst [vmem:[%s418 + $0x20] sm:$0xff] %v427
                  %v429 = vld [vmem:[%s417 + $0x8c] sm:$0xff]
                  %430 = vst [vmem:[%s418 + $0x28] sm:$0xff] %v429
                  %v431 = vld [vmem:[%s417 + $0xa8] sm:$0xff]
                  %432 = vst [vmem:[%s418 + $0x30] sm:$0xff] %v431
                  %v433 = vld [vmem:[%s417 + $0xc4] sm:$0xff]
                  %434 = vst [vmem:[%s418 + $0x38] sm:$0xff] %v433
                  %v435 = vld [vmem:[%s417 + $0xe0] sm:$0xff]
                  %436 = vst [vmem:[%s418 + $0x40] sm:$0xff] %v435
                  %v437 = vld [vmem:[%s417 + $0xfc] sm:$0xff]
                  %438 = vst [vmem:[%s418 + $0x48] sm:$0xff] %v437
                  %s439 = sadd.s32 1, %s416
                  %p440 = scmp.ge.s32.totalorder %s439, %s404
                  %s441 = scalar_select %p440, 0, %s439
                  %s442 = smul.u32 %s441, 8
                  %s443 = smul.u32 %s441, 8
                  %s444 = scalar_lea.vmem %s407, %s442
                  %s445 = scalar_lea.vmem %s409, %s443 [#allocation3]
                $region79: #{global_predictor_forward.1} parent=66 // loop_footer
                  %s413 = sadd.s32 %s411, 1
                $region80: #{global_predictor_forward.1} parent=66 // loop_footer_branch
                  %410 = sbr.rel target = $region76
                $region81: #{global_predictor_forward.1} parent=66 // loop_exit
                  _
              $region67: #{global_predictor_forward.1} parent=51 // pred_fallthru
                _
              %p446 = pneg %p301
              // Predicated region
              $region82: #{global_predictor_forward.1} parent=51 // pred_check
                _
              $region83: #{global_predictor_forward.1} parent=51 // pred_check_branch
                %448 = sbr.rel (%p301) target = $region85
              $region84: #{global_predictor_forward.1} parent=51 // pred_region
                %s449 = sand.u32 %s259, 7
                %s450 = ssub.s32 %s259, %s449
                %s451 = scalar_lea.vmem %s258, %s450
                %s452 = ssub.s32 %s259, %s449
                %s453 = scalar_lea.vmem %s248, %s452 [#allocation3]
                %s454 = sshrl.u32 %s259, 3
                %s455 = sshrl.u32 %s454, 2
                // While loop
                $region86: #{global_predictor_forward.1} parent=84 // loop_pre_header
                  _
                $region87: #{global_predictor_forward.1} parent=84 // loop_header
                  %s457 = sphi 0, %s459
                  %p458 = scmp.ge.s32.totalorder %s457, %s455
                  %s462 = sphi 0, %s547
                  %s463 = sphi %s258, %s550
                  %s464 = sphi %s248, %s551
                $region88: #{global_predictor_forward.1} parent=84 // loop_header_branch
                  %461 = sbr.rel (%p458) target = $region92
                $region89: #{global_predictor_forward.1} parent=84 // loop_body
                  %v465 = vld [vmem:[%s463] sm:$0xff]
                  %466 = vst [vmem:[%s464] sm:$0xff] %v465
                  %v467 = vld [vmem:[%s463 + $0x8] sm:$0xff]
                  %468 = vst [vmem:[%s464 + $0x8] sm:$0xff] %v467
                  %v469 = vld [vmem:[%s463 + $0x10] sm:$0xff]
                  %470 = vst [vmem:[%s464 + $0x10] sm:$0xff] %v469
                  %v471 = vld [vmem:[%s463 + $0x18] sm:$0xff]
                  %472 = vst [vmem:[%s464 + $0x18] sm:$0xff] %v471
                  %v473 = vld [vmem:[%s463 + $0x1c] sm:$0xff]
                  %474 = vst [vmem:[%s464 + $0x8] sm:$0xff] %v473
                  %v475 = vld [vmem:[%s463 + $0x24] sm:$0xff]
                  %476 = vst [vmem:[%s464 + $0x10] sm:$0xff] %v475
                  %v477 = vld [vmem:[%s463 + $0x2c] sm:$0xff]
                  %478 = vst [vmem:[%s464 + $0x18] sm:$0xff] %v477
                  %v479 = vld [vmem:[%s463 + $0x34] sm:$0xff]
                  %480 = vst [vmem:[%s464 + $0x20] sm:$0xff] %v479
                  %v481 = vld [vmem:[%s463 + $0x38] sm:$0xff]
                  %482 = vst [vmem:[%s464 + $0x10] sm:$0xff] %v481
                  %v483 = vld [vmem:[%s463 + $0x40] sm:$0xff]
                  %484 = vst [vmem:[%s464 + $0x18] sm:$0xff] %v483
                  %v485 = vld [vmem:[%s463 + $0x48] sm:$0xff]
                  %486 = vst [vmem:[%s464 + $0x20] sm:$0xff] %v485
                  %v487 = vld [vmem:[%s463 + $0x50] sm:$0xff]
                  %488 = vst [vmem:[%s464 + $0x28] sm:$0xff] %v487
                  %v489 = vld [vmem:[%s463 + $0x54] sm:$0xff]
                  %490 = vst [vmem:[%s464 + $0x18] sm:$0xff] %v489
                  %v491 = vld [vmem:[%s463 + $0x5c] sm:$0xff]
                  %492 = vst [vmem:[%s464 + $0x20] sm:$0xff] %v491
                  %v493 = vld [vmem:[%s463 + $0x64] sm:$0xff]
                  %494 = vst [vmem:[%s464 + $0x28] sm:$0xff] %v493
                  %v495 = vld [vmem:[%s463 + $0x6c] sm:$0xff]
                  %496 = vst [vmem:[%s464 + $0x30] sm:$0xff] %v495
                  %v497 = vld [vmem:[%s463 + $0x70] sm:$0xff]
                  %498 = vst [vmem:[%s464 + $0x20] sm:$0xff] %v497
                  %v499 = vld [vmem:[%s463 + $0x78] sm:$0xff]
                  %500 = vst [vmem:[%s464 + $0x28] sm:$0xff] %v499
                  %v501 = vld [vmem:[%s463 + $0x80] sm:$0xff]
                  %502 = vst [vmem:[%s464 + $0x30] sm:$0xff] %v501
                  %v503 = vld [vmem:[%s463 + $0x88] sm:$0xff]
                  %504 = vst [vmem:[%s464 + $0x38] sm:$0xff] %v503
                  %v505 = vld [vmem:[%s463 + $0x8c] sm:$0xff]
                  %506 = vst [vmem:[%s464 + $0x28] sm:$0xff] %v505
                  %v507 = vld [vmem:[%s463 + $0x94] sm:$0xff]
                  %508 = vst [vmem:[%s464 + $0x30] sm:$0xff] %v507
                  %v509 = vld [vmem:[%s463 + $0x9c] sm:$0xff]
                  %510 = vst [vmem:[%s464 + $0x38] sm:$0xff] %v509
                  %v511 = vld [vmem:[%s463 + $0xa4] sm:$0xff]
                  %512 = vst [vmem:[%s464 + $0x40] sm:$0xff] %v511
                  %v513 = vld [vmem:[%s463 + $0xa8] sm:$0xff]
                  %514 = vst [vmem:[%s464 + $0x30] sm:$0xff] %v513
                  %v515 = vld [vmem:[%s463 + $0xb0] sm:$0xff]
                  %516 = vst [vmem:[%s464 + $0x38] sm:$0xff] %v515
                  %v517 = vld [vmem:[%s463 + $0xb8] sm:$0xff]
                  %518 = vst [vmem:[%s464 + $0x40] sm:$0xff] %v517
                  %v519 = vld [vmem:[%s463 + $0xc0] sm:$0xff]
                  %520 = vst [vmem:[%s464 + $0x48] sm:$0xff] %v519
                  %v521 = vld [vmem:[%s463 + $0xc4] sm:$0xff]
                  %522 = vst [vmem:[%s464 + $0x38] sm:$0xff] %v521
                  %v523 = vld [vmem:[%s463 + $0xcc] sm:$0xff]
                  %524 = vst [vmem:[%s464 + $0x40] sm:$0xff] %v523
                  %v525 = vld [vmem:[%s463 + $0xd4] sm:$0xff]
                  %526 = vst [vmem:[%s464 + $0x48] sm:$0xff] %v525
                  %v527 = vld [vmem:[%s463 + $0xdc] sm:$0xff]
                  %528 = vst [vmem:[%s464 + $0x50] sm:$0xff] %v527
                  %v529 = vld [vmem:[%s463 + $0xe0] sm:$0xff]
                  %530 = vst [vmem:[%s464 + $0x40] sm:$0xff] %v529
                  %v531 = vld [vmem:[%s463 + $0xe8] sm:$0xff]
                  %532 = vst [vmem:[%s464 + $0x48] sm:$0xff] %v531
                  %v533 = vld [vmem:[%s463 + $0xf0] sm:$0xff]
                  %534 = vst [vmem:[%s464 + $0x50] sm:$0xff] %v533
                  %v535 = vld [vmem:[%s463 + $0xf8] sm:$0xff]
                  %536 = vst [vmem:[%s464 + $0x58] sm:$0xff] %v535
                  %v537 = vld [vmem:[%s463 + $0xfc] sm:$0xff]
                  %538 = vst [vmem:[%s464 + $0x48] sm:$0xff] %v537
                  %v539 = vld [vmem:[%s463 + $0x104] sm:$0xff]
                  %540 = vst [vmem:[%s464 + $0x50] sm:$0xff] %v539
                  %v541 = vld [vmem:[%s463 + $0x10c] sm:$0xff]
                  %542 = vst [vmem:[%s464 + $0x58] sm:$0xff] %v541
                  %v543 = vld [vmem:[%s463 + $0x114] sm:$0xff]
                  %544 = vst [vmem:[%s464 + $0x60] sm:$0xff] %v543
                  %s545 = sadd.s32 1, %s462
                  %p546 = scmp.ge.s32.totalorder %s545, %s455
                  %s547 = scalar_select %p546, 0, %s545
                  %s548 = smul.u32 %s547, 32
                  %s549 = smul.u32 %s547, 32
                  %s550 = scalar_lea.vmem %s258, %s548
                  %s551 = scalar_lea.vmem %s248, %s549 [#allocation3]
                $region90: #{global_predictor_forward.1} parent=84 // loop_footer
                  %s459 = sadd.s32 %s457, 1
                $region91: #{global_predictor_forward.1} parent=84 // loop_footer_branch
                  %456 = sbr.rel target = $region87
                $region92: #{global_predictor_forward.1} parent=84 // loop_exit
                  _
                %s552 = sshrl.u32 %s454, 2
                %s553 = sand.u32 %s454, 3
                %s554 = smul.u32 %s552, 4
                %s555 = smul.u32 8, %s554
                %s556 = scalar_lea.vmem %s258, %s555
                %s557 = smul.u32 8, %s554
                %s558 = scalar_lea.vmem %s248, %s557 [#allocation3]
                // While loop
                $region93: #{global_predictor_forward.1} parent=84 // loop_pre_header
                  _
                $region94: #{global_predictor_forward.1} parent=84 // loop_header
                  %s560 = sphi 0, %s562
                  %p561 = scmp.ge.s32.totalorder %s560, %s553
                  %s565 = sphi 0, %s590
                  %s566 = sphi %s556, %s593
                  %s567 = sphi %s558, %s594
                $region95: #{global_predictor_forward.1} parent=84 // loop_header_branch
                  %564 = sbr.rel (%p561) target = $region99
                $region96: #{global_predictor_forward.1} parent=84 // loop_body
                  %v568 = vld [vmem:[%s566] sm:$0xff]
                  %569 = vst [vmem:[%s567] sm:$0xff] %v568
                  %v570 = vld [vmem:[%s566 + $0x1c] sm:$0xff]
                  %571 = vst [vmem:[%s567 + $0x8] sm:$0xff] %v570
                  %v572 = vld [vmem:[%s566 + $0x38] sm:$0xff]
                  %573 = vst [vmem:[%s567 + $0x10] sm:$0xff] %v572
                  %v574 = vld [vmem:[%s566 + $0x54] sm:$0xff]
                  %575 = vst [vmem:[%s567 + $0x18] sm:$0xff] %v574
                  %v576 = vld [vmem:[%s566 + $0x70] sm:$0xff]
                  %577 = vst [vmem:[%s567 + $0x20] sm:$0xff] %v576
                  %v578 = vld [vmem:[%s566 + $0x8c] sm:$0xff]
                  %579 = vst [vmem:[%s567 + $0x28] sm:$0xff] %v578
                  %v580 = vld [vmem:[%s566 + $0xa8] sm:$0xff]
                  %581 = vst [vmem:[%s567 + $0x30] sm:$0xff] %v580
                  %v582 = vld [vmem:[%s566 + $0xc4] sm:$0xff]
                  %583 = vst [vmem:[%s567 + $0x38] sm:$0xff] %v582
                  %v584 = vld [vmem:[%s566 + $0xe0] sm:$0xff]
                  %585 = vst [vmem:[%s567 + $0x40] sm:$0xff] %v584
                  %v586 = vld [vmem:[%s566 + $0xfc] sm:$0xff]
                  %587 = vst [vmem:[%s567 + $0x48] sm:$0xff] %v586
                  %s588 = sadd.s32 1, %s565
                  %p589 = scmp.ge.s32.totalorder %s588, %s553
                  %s590 = scalar_select %p589, 0, %s588
                  %s591 = smul.u32 %s590, 8
                  %s592 = smul.u32 %s590, 8
                  %s593 = scalar_lea.vmem %s556, %s591
                  %s594 = scalar_lea.vmem %s558, %s592 [#allocation3]
                $region97: #{global_predictor_forward.1} parent=84 // loop_footer
                  %s562 = sadd.s32 %s560, 1
                $region98: #{global_predictor_forward.1} parent=84 // loop_footer_branch
                  %559 = sbr.rel target = $region94
                $region99: #{global_predictor_forward.1} parent=84 // loop_exit
                  _
                %s595 = sshll.u32 1, %s449
                %s596 = ssub.s32 %s595, 1
                loop: start=0, step=1, limit=1
                $region100: #{global_predictor_forward.1} parent=84 // loop_pre_header
                  _
                $region101: #{global_predictor_forward.1} parent=84 // loop_header
                  %s598 = sphi 0, %s602
                  %p599 = scmp.ge.s32.totalorder %s598, 1
                  %s603 = sphi %s451, %s451
                  %s604 = sphi %s453, %s453
                $region102: #{global_predictor_forward.1} parent=84 // loop_header_branch
                  %601 = sbr.rel (%p599) target = $region106
                $region103: #{global_predictor_forward.1} parent=84 // loop_body
                  %v605 = vld [vmem:[%s603] sm:%s596]
                  %606 = vst [vmem:[%s604] sm:%s596] %v605
                  %v607 = vld [vmem:[%s603 + $0x1c] sm:%s596]
                  %608 = vst [vmem:[%s604 + $0x8] sm:%s596] %v607
                  %v609 = vld [vmem:[%s603 + $0x38] sm:%s596]
                  %610 = vst [vmem:[%s604 + $0x10] sm:%s596] %v609
                  %v611 = vld [vmem:[%s603 + $0x54] sm:%s596]
                  %612 = vst [vmem:[%s604 + $0x18] sm:%s596] %v611
                  %v613 = vld [vmem:[%s603 + $0x70] sm:%s596]
                  %614 = vst [vmem:[%s604 + $0x20] sm:%s596] %v613
                  %v615 = vld [vmem:[%s603 + $0x8c] sm:%s596]
                  %616 = vst [vmem:[%s604 + $0x28] sm:%s596] %v615
                  %v617 = vld [vmem:[%s603 + $0xa8] sm:%s596]
                  %618 = vst [vmem:[%s604 + $0x30] sm:%s596] %v617
                  %v619 = vld [vmem:[%s603 + $0xc4] sm:%s596]
                  %620 = vst [vmem:[%s604 + $0x38] sm:%s596] %v619
                  %v621 = vld [vmem:[%s603 + $0xe0] sm:%s596]
                  %622 = vst [vmem:[%s604 + $0x40] sm:%s596] %v621
                  %v623 = vld [vmem:[%s603 + $0xfc] sm:%s596]
                  %624 = vst [vmem:[%s604 + $0x48] sm:%s596] %v623
                $region104: #{global_predictor_forward.1} parent=84 // loop_footer
                  %s602 = sadd.s32 1, %s598
                $region105: #{global_predictor_forward.1} parent=84 // loop_footer_branch
                  %597 = sbr.rel target = $region101
                $region106: #{global_predictor_forward.1} parent=84 // loop_exit
                  _
              $region85: #{global_predictor_forward.1} parent=51 // pred_fallthru
                _
            $region52: #{global_predictor_forward.1} parent=47 // pred_fallthru
              _
            // Predicated region
            $region53: #{global_predictor_forward.1} parent=47 // pred_check
              %p267 = pneg %p263
            $region54: #{global_predictor_forward.1} parent=47 // pred_check_branch
              %269 = sbr.rel (%p267) target = $region56
            $region55: #{global_predictor_forward.1} parent=47 // pred_region
              %s270 = sshll.u32 1, %s259
              %s271 = ssub.s32 %s270, 1
              loop: start=0, step=1, limit=1
              $region57: #{global_predictor_forward.1} parent=55 // loop_pre_header
                _
              $region58: #{global_predictor_forward.1} parent=55 // loop_header
                %s273 = sphi 0, %s277
                %p274 = scmp.ge.s32.totalorder %s273, 1
                %s278 = sphi %s258, %s258
                %s279 = sphi %s248, %s248
              $region59: #{global_predictor_forward.1} parent=55 // loop_header_branch
                %276 = sbr.rel (%p274) target = $region63
              $region60: #{global_predictor_forward.1} parent=55 // loop_body
                %v280 = vld [vmem:[%s278] sm:%s271]
                %281 = vst [vmem:[%s279] sm:%s271] %v280
                %v282 = vld [vmem:[%s278 + $0x1c] sm:%s271]
                %283 = vst [vmem:[%s279 + $0x8] sm:%s271] %v282
                %v284 = vld [vmem:[%s278 + $0x38] sm:%s271]
                %285 = vst [vmem:[%s279 + $0x10] sm:%s271] %v284
                %v286 = vld [vmem:[%s278 + $0x54] sm:%s271]
                %287 = vst [vmem:[%s279 + $0x18] sm:%s271] %v286
                %v288 = vld [vmem:[%s278 + $0x70] sm:%s271]
                %289 = vst [vmem:[%s279 + $0x20] sm:%s271] %v288
                %v290 = vld [vmem:[%s278 + $0x8c] sm:%s271]
                %291 = vst [vmem:[%s279 + $0x28] sm:%s271] %v290
                %v292 = vld [vmem:[%s278 + $0xa8] sm:%s271]
                %293 = vst [vmem:[%s279 + $0x30] sm:%s271] %v292
                %v294 = vld [vmem:[%s278 + $0xc4] sm:%s271]
                %295 = vst [vmem:[%s279 + $0x38] sm:%s271] %v294
                %v296 = vld [vmem:[%s278 + $0xe0] sm:%s271]
                %297 = vst [vmem:[%s279 + $0x40] sm:%s271] %v296
                %v298 = vld [vmem:[%s278 + $0xfc] sm:%s271]
                %299 = vst [vmem:[%s279 + $0x48] sm:%s271] %v298
              $region61: #{global_predictor_forward.1} parent=55 // loop_footer
                %s277 = sadd.s32 1, %s273
              $region62: #{global_predictor_forward.1} parent=55 // loop_footer_branch
                %272 = sbr.rel target = $region58
              $region63: #{global_predictor_forward.1} parent=55 // loop_exit
                _
            $region56: #{global_predictor_forward.1} parent=47 // pred_fallthru
              _
          $region48: #{global_predictor_forward.1} parent=43 // pred_fallthru
            _
          %625 = vnop
        $region44: #{global_predictor_forward.1} parent=39 // pred_fallthru
          _
      $region40: #{global_predictor_forward.1} parent=5 // pred_fallthru
        _
      %p626 = scmp.le.s32.totalorder 1, %s13
      %p627 = scmp.lt.s32.totalorder %s13, 9
      %p628 = pnand %p626, %p627
      %p629 = pneg %p628
      // Predicated region
      $region107: #{global_predictor_forward.1} parent=5 // pred_check
        _
      $region108: #{global_predictor_forward.1} parent=5 // pred_check_branch
        %631 = sbr.rel (%p628) target = $region110
      $region109: #{global_predictor_forward.1} parent=5 // pred_region
        %s632 = ssub.s32 %s13, 1
        %s633 = sand.u32 %s40, 1
        %s634 = sand.u32 %s40, 1
        %s635 = smul.addr %s634, 80
        %s636 = scalar_lea.vmem [#allocation3], %s635
        // Predicated region
        $region111: #{global_predictor_forward.1} parent=109 // pred_check
          %p637 = pneg %p53
        $region112: #{global_predictor_forward.1} parent=109 // pred_check_branch
          %639 = sbr.rel (%p637) target = $region114
        $region113: #{global_predictor_forward.1} parent=109 // pred_region
          _
        $region114: #{global_predictor_forward.1} parent=109 // pred_fallthru
          _
        %s640 = sand.u32 %s40, 1
        %s641 = sand.u32 %s40, 1
        %s642 = smul.addr %s641, 80
        %s643 = scalar_lea.vmem [#allocation3], %s642
        %p644 = pneg %p53
        %p645 = pneg %p50
        %p646 = pneg %p74
        %p647 = pneg %p71
        %p648 = pneg %p95
        %p649 = pneg %p92
        %p650 = pneg %p116
        %p651 = pneg %p113
        %p652 = pneg %p137
        %p653 = pneg %p134
        %p654 = pneg %p158
        %p655 = pneg %p155
        %p656 = pneg %p179
        %p657 = pneg %p176
        %p658 = pneg %p205
        %p659 = pneg %p202
        %p660 = scmp.lt.s32.totalorder %s22, 1
        %s661 = scalar_select %p660, %s22, 1
        %s662 = smul.addr %s661, 2
        %s663 = scalar_lea.vmem %s7, %s662
        %s664 = smul.u32 2, %s23
        %s665 = ssub.s32 7, %s664
        %p666 = scmp.lt.s32.totalorder %s665, 2
        %s667 = scalar_select %p666, %s665, 2
        %s668 = smul.u32 40, %s667
        %p669 = scmp.lt.s32.totalorder %s22, 1
        %s670 = scalar_select %p669, %s22, 1
        %s671 = smul.addr %s670, 2
        %s672 = scalar_lea.vmem %s7, %s671
        %p674 = scmp.eq.s32.totalorder %s23, 0
        // Predicated region
        $region115: #{global_predictor_forward.1} parent=109 // pred_check
          %p675 = pneg %p674
        $region116: #{global_predictor_forward.1} parent=109 // pred_check_branch
          %677 = sbr.rel (%p675) target = $region118
        $region117: #{global_predictor_forward.1} parent=109 // pred_region
          %678 = vst [vmem:[#allocation2] sm:$0xff] 0.0
          %679 = vst [vmem:[#allocation2 + $0x8] sm:$0xff] 0.0
          %680 = vst [vmem:[#allocation2 + $0x10] sm:$0xff] 0.0
          %681 = vst [vmem:[#allocation2 + $0x18] sm:$0xff] 0.0
          %682 = vst [vmem:[#allocation2 + $0x20] sm:$0xff] 0.0
          %683 = vst [vmem:[#allocation2 + $0x28] sm:$0xff] 0.0
          %684 = vst [vmem:[#allocation2 + $0x30] sm:$0xff] 0.0
          %685 = vst [vmem:[#allocation2 + $0x38] sm:$0xff] 0.0
        $region118: #{global_predictor_forward.1} parent=109 // pred_fallthru
          _
        %v686 = vld [vmem:[%s636] sm:$0xff]
        %v687 = vld [vmem:[%s636 + $0x8] sm:$0xff]
        %v688 = vld [vmem:[%s636 + $0x10] sm:$0xff]
        %v689 = vld [vmem:[%s636 + $0x18] sm:$0xff]
        %v690 = vld [vmem:[%s636 + $0x20] sm:$0xff]
        %v691 = vld [vmem:[%s636 + $0x28] sm:$0xff]
        %v692 = vld [vmem:[%s636 + $0x30] sm:$0xff]
        %v693 = vld [vmem:[%s636 + $0x38] sm:$0xff]
        %v694 = vld [vmem:[%s636 + $0x40] sm:$0xff]
        %v695 = vld [vmem:[%s636 + $0x48] sm:$0x33]
        %v696 = vld [vmem:[%s4] sm:$0xff]
        %v697 = vld [vmem:[%s4 + $0x8] sm:$0xff]
        %v698 = vld [vmem:[%s4 + $0x10] sm:$0xff]
        %v699 = vld [vmem:[%s4 + $0x18] sm:$0xff]
        %v700 = vld [vmem:[%s4 + $0x20] sm:$0xff]
        %v701 = vld [vmem:[%s4 + $0x28] sm:$0xff]
        %v702 = vld [vmem:[%s4 + $0x30] sm:$0xff]
        %v703 = vld [vmem:[%s4 + $0x38] sm:$0xff]
        %v704 = vld [vmem:[%s4 + $0x40] sm:$0xff]
        %v705 = vld [vmem:[%s4 + $0x48] sm:$0xff]
        %v706 = vld [vmem:[%s4 + $0x50] sm:$0xff]
        %v707 = vld [vmem:[%s4 + $0x58] sm:$0xff]
        %v708 = vld [vmem:[%s4 + $0x60] sm:$0xff]
        %v709 = vld [vmem:[%s4 + $0x68] sm:$0xff]
        %v710 = vld [vmem:[%s4 + $0x70] sm:$0xff]
        %v711 = vld [vmem:[%s4 + $0x78] sm:$0xff]
        %v712 = vld [vmem:[%s4 + $0x80] sm:$0xff]
        %v713 = vld [vmem:[%s4 + $0x88] sm:$0xff]
        %v714 = vld [vmem:[%s4 + $0x90] sm:$0xff]
        %v715 = vld [vmem:[%s4 + $0x98] sm:$0xff]
        %v716 = vld [vmem:[%s4 + $0xa0] sm:$0xff]
        %v717 = vld [vmem:[%s4 + $0xa8] sm:$0xff]
        %v718 = vld [vmem:[%s4 + $0xb0] sm:$0xff]
        %v719 = vld [vmem:[%s4 + $0xb8] sm:$0xff]
        %v720 = vld [vmem:[%s1] sm:$0xf]
        %v721 = vld [vmem:[%s1 + $0x4] sm:$0xf]
        %v722 = vld [vmem:[%s1 + $0x8] sm:$0xf]
        %v723 = vld [vmem:[%s1 + $0xc] sm:$0xf]
        %v724 = vld [vmem:[%s1 + $0x10] sm:$0xf]
        %v725 = vld [vmem:[%s1 + $0x14] sm:$0xf]
        %v726 = vld [vmem:[%s1 + $0x18] sm:$0xf]
        %v727 = vld [vmem:[%s1 + $0x1c] sm:$0xf]
        %729 = vset.pattern.permute.xlu0 0
        %730 = vperm.xlu0 %729, %v696
        %v731 = vpop.permute.xlu0 %730
        %734 = vset.pattern.permute.xlu0 0
        %735 = vperm.xlu0 %734, %v697
        %v736 = vpop.permute.xlu0 %735
        %739 = vset.pattern.permute.xlu0 0
        %740 = vperm.xlu0 %739, %v698
        %v741 = vpop.permute.xlu0 %740
        %744 = vset.pattern.permute.xlu0 0
        %745 = vperm.xlu0 %744, %v699
        %v746 = vpop.permute.xlu0 %745
        %749 = vset.pattern.permute.xlu0 0
        %750 = vperm.xlu0 %749, %v700
        %v751 = vpop.permute.xlu0 %750
        %754 = vset.pattern.permute.xlu0 0
        %755 = vperm.xlu0 %754, %v701
        %v756 = vpop.permute.xlu0 %755
        %759 = vset.pattern.permute.xlu0 0
        %760 = vperm.xlu0 %759, %v702
        %v761 = vpop.permute.xlu0 %760
        %764 = vset.pattern.permute.xlu0 0
        %765 = vperm.xlu0 %764, %v703
        %v766 = vpop.permute.xlu0 %765
        %v776 = vunpack.c.l.b16 %v720
        %v777 = vunpack.c.l.b16 %v721
        %v778 = vunpack.c.l.b16 %v722
        %v779 = vunpack.c.l.b16 %v723
        %v780 = vunpack.c.l.b16 %v724
        %v781 = vunpack.c.l.b16 %v725
        %v782 = vunpack.c.l.b16 %v726
        %v783 = vunpack.c.l.b16 %v727
        %v784 = vpack.c.b16 %v777, %v776
        %v785 = vpack.c.b16 %v779, %v778
        %v786 = vpack.c.b16 %v781, %v780
        %v787 = vpack.c.b16 %v783, %v782
        %v798 = vunpack.c.l.b16 %v686
        %v799 = vunpack.c.h.b16 %v686
        %v800 = vunpack.c.l.b16 %v687
        %v801 = vunpack.c.h.b16 %v687
        %v802 = vunpack.c.l.b16 %v688
        %v803 = vunpack.c.h.b16 %v688
        %v804 = vunpack.c.l.b16 %v689
        %v805 = vunpack.c.h.b16 %v689
        %v806 = vunpack.c.l.b16 %v690
        %v807 = vunpack.c.h.b16 %v690
        %v808 = vunpack.c.l.b16 %v691
        %v809 = vunpack.c.h.b16 %v691
        %v810 = vunpack.c.l.b16 %v692
        %v811 = vunpack.c.h.b16 %v692
        %v812 = vunpack.c.l.b16 %v693
        %v813 = vunpack.c.h.b16 %v693
        %v814 = vunpack.c.l.b16 %v694
        %v815 = vunpack.c.h.b16 %v694
        %v816 = vunpack.c.l.b16 %v695
        %v817 = vunpack.c.h.b16 %v695
        %v818 = vpack.c.b16 %v800, %v798
        %v819 = vpack.c.b16 %v801, %v799
        %v820 = vpack.c.b16 %v804, %v802
        %v821 = vpack.c.b16 %v805, %v803
        %v822 = vpack.c.b16 %v808, %v806
        %v823 = vpack.c.b16 %v809, %v807
        %v824 = vpack.c.b16 %v812, %v810
        %v825 = vpack.c.b16 %v813, %v811
        %v826 = vpack.c.b16 %v816, %v814
        %v827 = vpack.c.b16 %v817, %v815
        %vm836 = vcmask 613376
        %v838 = vsel %vm836, %v784, 0
        %v841 = vsel %vm836, %v785, 0
        %v844 = vsel %vm836, %v786, 0
        %v847 = vsel %vm836, %v787, 0
        %vm849 = vcmask 1044480
        %vm850 = vcmask 1045504
        %v851 = vsel %vm849, 4294967295, 65535
        %v852 = vsel %vm850, %v851, 0
        %v854 = vand.u32 %v826, %v852
        %v857 = vand.u32 %v827, %v852
        %859 = vmatpush.bf16.msra.mxu0 0
        %860 = vmatpush.bf16.msra.mxu0 0
        %861 = vmatpush.bf16.msra.mxu0 0
        %862 = vmatpush.bf16.msra.mxu0 %v854
        %863 = vmatpush.bf16.msra.mxu0 %v824
        %864 = vmatpush.bf16.msra.mxu0 %v822
        %865 = vmatpush.bf16.msra.mxu0 %v820
        %866 = vmatpush.bf16.msra.mxu0 %v818
        %867 = vmatmul.bf16.gmra.mxu0 %v838
        %v868 = vpop.f32.mrf.mxu0
        %v869 = vadd.f32 %v731, %v868
        %v870 = vpop.f32.mrf.mxu0
        %v871 = vadd.f32 %v736, %v870
        %872 = vmatmul.bf16.gmra.mxu0 %v841
        %v873 = vpop.f32.mrf.mxu0
        %v874 = vadd.f32 %v741, %v873
        %v875 = vpop.f32.mrf.mxu0
        %v876 = vadd.f32 %v746, %v875
        %877 = vmatmul.bf16.gmra.mxu0 %v844
        %v878 = vpop.f32.mrf.mxu0
        %v879 = vadd.f32 %v751, %v878
        %v880 = vpop.f32.mrf.mxu0
        %v881 = vadd.f32 %v756, %v880
        %882 = vmatmul.bf16.gmra.mxu0 %v847
        %v883 = vpop.f32.mrf.mxu0
        %v884 = vadd.f32 %v761, %v883
        %v885 = vpop.f32.mrf.mxu0
        %v886 = vadd.f32 %v766, %v885
        %887 = vdwg.mxu0
        %888 = vmatpush.bf16.msra.mxu0 0
        %889 = vmatpush.bf16.msra.mxu0 0
        %890 = vmatpush.bf16.msra.mxu0 0
        %891 = vmatpush.bf16.msra.mxu0 %v857
        %892 = vmatpush.bf16.msra.mxu0 %v825
        %893 = vmatpush.bf16.msra.mxu0 %v823
        %894 = vmatpush.bf16.msra.mxu0 %v821
        %895 = vmatpush.bf16.msra.mxu0 %v819
        %896 = vmatmul.bf16.gmra.mxu0 %v838
        %v897 = vpop.f32.mrf.mxu0
        %v898 = vadd.f32 %v731, %v897
        %v899 = vpop.f32.mrf.mxu0
        %v900 = vadd.f32 %v736, %v899
        %901 = vmatmul.bf16.gmra.mxu0 %v841
        %v902 = vpop.f32.mrf.mxu0
        %v903 = vadd.f32 %v741, %v902
        %v904 = vpop.f32.mrf.mxu0
        %v905 = vadd.f32 %v746, %v904
        %906 = vmatmul.bf16.gmra.mxu0 %v844
        %v907 = vpop.f32.mrf.mxu0
        %v908 = vadd.f32 %v751, %v907
        %v909 = vpop.f32.mrf.mxu0
        %v910 = vadd.f32 %v756, %v909
        %911 = vmatmul.bf16.gmra.mxu0 %v847
        %v912 = vpop.f32.mrf.mxu0
        %v913 = vadd.f32 %v761, %v912
        %v914 = vpop.f32.mrf.mxu0
        %v915 = vadd.f32 %v766, %v914
        %916 = vdwg.mxu0
        %v917 = vmax.f32 %v869, 0.0
        %v918 = vmax.f32 %v898, 0.0
        %v919 = vmax.f32 %v871, 0.0
        %v920 = vmax.f32 %v900, 0.0
        %v921 = vmax.f32 %v874, 0.0
        %v922 = vmax.f32 %v903, 0.0
        %v923 = vmax.f32 %v876, 0.0
        %v924 = vmax.f32 %v905, 0.0
        %v925 = vmax.f32 %v879, 0.0
        %v926 = vmax.f32 %v908, 0.0
        %v927 = vmax.f32 %v881, 0.0
        %v928 = vmax.f32 %v910, 0.0
        %v929 = vmax.f32 %v884, 0.0
        %v930 = vmax.f32 %v913, 0.0
        %v931 = vmax.f32 %v886, 0.0
        %v932 = vmax.f32 %v915, 0.0
        %v933 = vpack.c.bf16 %v918, %v917
        %v934 = vpack.c.bf16 %v920, %v919
        %v935 = vpack.c.bf16 %v922, %v921
        %v936 = vpack.c.bf16 %v924, %v923
        %v937 = vpack.c.bf16 %v926, %v925
        %v938 = vpack.c.bf16 %v928, %v927
        %v939 = vpack.c.bf16 %v930, %v929
        %v940 = vpack.c.bf16 %v932, %v931
        %v941 = vld [vmem:[%s2] sm:$0xf]
        %v942 = vld [vmem:[%s2 + $0x4] sm:$0xf]
        %v943 = vld [vmem:[%s2 + $0x8] sm:$0xf]
        %v944 = vld [vmem:[%s2 + $0xc] sm:$0xf]
        %v945 = vld [vmem:[%s2 + $0x10] sm:$0xf]
        %v946 = vld [vmem:[%s2 + $0x14] sm:$0xf]
        %v947 = vld [vmem:[%s2 + $0x18] sm:$0xf]
        %v948 = vld [vmem:[%s2 + $0x1c] sm:$0xf]
        %950 = vset.pattern.permute.xlu0 0
        %951 = vperm.xlu0 %950, %v704
        %v952 = vpop.permute.xlu0 %951
        %955 = vset.pattern.permute.xlu0 0
        %956 = vperm.xlu0 %955, %v705
        %v957 = vpop.permute.xlu0 %956
        %960 = vset.pattern.permute.xlu0 0
        %961 = vperm.xlu0 %960, %v706
        %v962 = vpop.permute.xlu0 %961
        %965 = vset.pattern.permute.xlu0 0
        %966 = vperm.xlu0 %965, %v707
        %v967 = vpop.permute.xlu0 %966
        %970 = vset.pattern.permute.xlu0 0
        %971 = vperm.xlu0 %970, %v708
        %v972 = vpop.permute.xlu0 %971
        %975 = vset.pattern.permute.xlu0 0
        %976 = vperm.xlu0 %975, %v709
        %v977 = vpop.permute.xlu0 %976
        %980 = vset.pattern.permute.xlu0 0
        %981 = vperm.xlu0 %980, %v710
        %v982 = vpop.permute.xlu0 %981
        %985 = vset.pattern.permute.xlu0 0
        %986 = vperm.xlu0 %985, %v711
        %v987 = vpop.permute.xlu0 %986
        %v997 = vunpack.c.l.b16 %v941
        %v998 = vunpack.c.l.b16 %v942
        %v999 = vunpack.c.l.b16 %v943
        %v1000 = vunpack.c.l.b16 %v944
        %v1001 = vunpack.c.l.b16 %v945
        %v1002 = vunpack.c.l.b16 %v946
        %v1003 = vunpack.c.l.b16 %v947
        %v1004 = vunpack.c.l.b16 %v948
        %v1005 = vpack.c.b16 %v998, %v997
        %v1006 = vpack.c.b16 %v1000, %v999
        %v1007 = vpack.c.b16 %v1002, %v1001
        %v1008 = vpack.c.b16 %v1004, %v1003
        %v1017 = vunpack.c.l.b16 %v933
        %v1018 = vunpack.c.h.b16 %v933
        %v1019 = vunpack.c.l.b16 %v934
        %v1020 = vunpack.c.h.b16 %v934
        %v1021 = vunpack.c.l.b16 %v935
        %v1022 = vunpack.c.h.b16 %v935
        %v1023 = vunpack.c.l.b16 %v936
        %v1024 = vunpack.c.h.b16 %v936
        %v1025 = vunpack.c.l.b16 %v937
        %v1026 = vunpack.c.h.b16 %v937
        %v1027 = vunpack.c.l.b16 %v938
        %v1028 = vunpack.c.h.b16 %v938
        %v1029 = vunpack.c.l.b16 %v939
        %v1030 = vunpack.c.h.b16 %v939
        %v1031 = vunpack.c.l.b16 %v940
        %v1032 = vunpack.c.h.b16 %v940
        %v1033 = vpack.c.b16 %v1019, %v1017
        %v1034 = vpack.c.b16 %v1020, %v1018
        %v1035 = vpack.c.b16 %v1023, %v1021
        %v1036 = vpack.c.b16 %v1024, %v1022
        %v1037 = vpack.c.b16 %v1027, %v1025
        %v1038 = vpack.c.b16 %v1028, %v1026
        %v1039 = vpack.c.b16 %v1031, %v1029
        %v1040 = vpack.c.b16 %v1032, %v1030
        %vm1049 = vcmask 523264
        %v1051 = vsel %vm1049, %v1005, 0
        %v1054 = vsel %vm1049, %v1006, 0
        %v1057 = vsel %vm1049, %v1007, 0
        %v1060 = vsel %vm1049, %v1008, 0
        %1062 = vmatpush.bf16.msra.mxu0 0
        %1063 = vmatpush.bf16.msra.mxu0 0
        %1064 = vmatpush.bf16.msra.mxu0 0
        %1065 = vmatpush.bf16.msra.mxu0 0
        %1066 = vmatpush.bf16.msra.mxu0 %v1039
        %1067 = vmatpush.bf16.msra.mxu0 %v1037
        %1068 = vmatpush.bf16.msra.mxu0 %v1035
        %1069 = vmatpush.bf16.msra.mxu0 %v1033
        %1070 = vmatmul.bf16.gmra.mxu0 %v1051
        %v1071 = vpop.f32.mrf.mxu0
        %v1072 = vadd.f32 %v952, %v1071
        %v1073 = vpop.f32.mrf.mxu0
        %v1074 = vadd.f32 %v957, %v1073
        %1075 = vmatmul.bf16.gmra.mxu0 %v1054
        %v1076 = vpop.f32.mrf.mxu0
        %v1077 = vadd.f32 %v962, %v1076
        %v1078 = vpop.f32.mrf.mxu0
        %v1079 = vadd.f32 %v967, %v1078
        %1080 = vmatmul.bf16.gmra.mxu0 %v1057
        %v1081 = vpop.f32.mrf.mxu0
        %v1082 = vadd.f32 %v972, %v1081
        %v1083 = vpop.f32.mrf.mxu0
        %v1084 = vadd.f32 %v977, %v1083
        %1085 = vmatmul.bf16.gmra.mxu0 %v1060
        %v1086 = vpop.f32.mrf.mxu0
        %v1087 = vadd.f32 %v982, %v1086
        %v1088 = vpop.f32.mrf.mxu0
        %v1089 = vadd.f32 %v987, %v1088
        %1090 = vdwg.mxu0
        %1091 = vmatpush.bf16.msra.mxu0 0
        %1092 = vmatpush.bf16.msra.mxu0 0
        %1093 = vmatpush.bf16.msra.mxu0 0
        %1094 = vmatpush.bf16.msra.mxu0 0
        %1095 = vmatpush.bf16.msra.mxu0 %v1040
        %1096 = vmatpush.bf16.msra.mxu0 %v1038
        %1097 = vmatpush.bf16.msra.mxu0 %v1036
        %1098 = vmatpush.bf16.msra.mxu0 %v1034
        %1099 = vmatmul.bf16.gmra.mxu0 %v1051
        %v1100 = vpop.f32.mrf.mxu0
        %v1101 = vadd.f32 %v952, %v1100
        %v1102 = vpop.f32.mrf.mxu0
        %v1103 = vadd.f32 %v957, %v1102
        %1104 = vmatmul.bf16.gmra.mxu0 %v1054
        %v1105 = vpop.f32.mrf.mxu0
        %v1106 = vadd.f32 %v962, %v1105
        %v1107 = vpop.f32.mrf.mxu0
        %v1108 = vadd.f32 %v967, %v1107
        %1109 = vmatmul.bf16.gmra.mxu0 %v1057
        %v1110 = vpop.f32.mrf.mxu0
        %v1111 = vadd.f32 %v972, %v1110
        %v1112 = vpop.f32.mrf.mxu0
        %v1113 = vadd.f32 %v977, %v1112
        %1114 = vmatmul.bf16.gmra.mxu0 %v1060
        %v1115 = vpop.f32.mrf.mxu0
        %v1116 = vadd.f32 %v982, %v1115
        %v1117 = vpop.f32.mrf.mxu0
        %v1118 = vadd.f32 %v987, %v1117
        %1119 = vdwg.mxu0
        %v1120 = vmax.f32 %v1072, 0.0
        %v1121 = vmax.f32 %v1101, 0.0
        %v1122 = vmax.f32 %v1074, 0.0
        %v1123 = vmax.f32 %v1103, 0.0
        %v1124 = vmax.f32 %v1077, 0.0
        %v1125 = vmax.f32 %v1106, 0.0
        %v1126 = vmax.f32 %v1079, 0.0
        %v1127 = vmax.f32 %v1108, 0.0
        %v1128 = vmax.f32 %v1082, 0.0
        %v1129 = vmax.f32 %v1111, 0.0
        %v1130 = vmax.f32 %v1084, 0.0
        %v1131 = vmax.f32 %v1113, 0.0
        %v1132 = vmax.f32 %v1087, 0.0
        %v1133 = vmax.f32 %v1116, 0.0
        %v1134 = vmax.f32 %v1089, 0.0
        %v1135 = vmax.f32 %v1118, 0.0
        %v1136 = vpack.c.bf16 %v1122, %v1120
        %v1137 = vpack.c.bf16 %v1123, %v1121
        %v1138 = vpack.c.bf16 %v1126, %v1124
        %v1139 = vpack.c.bf16 %v1127, %v1125
        %v1140 = vpack.c.bf16 %v1130, %v1128
        %v1141 = vpack.c.bf16 %v1131, %v1129
        %v1142 = vpack.c.bf16 %v1134, %v1132
        %v1143 = vpack.c.bf16 %v1135, %v1133
        %v1144 = vld [vmem:[%s3] sm:$0xf]
        %v1145 = vld [vmem:[%s3 + $0x4] sm:$0xf]
        %v1146 = vld [vmem:[%s3 + $0x8] sm:$0xf]
        %v1147 = vld [vmem:[%s3 + $0xc] sm:$0xf]
        %v1148 = vld [vmem:[%s3 + $0x10] sm:$0xf]
        %v1149 = vld [vmem:[%s3 + $0x14] sm:$0xf]
        %v1150 = vld [vmem:[%s3 + $0x18] sm:$0xf]
        %v1151 = vld [vmem:[%s3 + $0x1c] sm:$0xf]
        %1153 = vset.pattern.permute.xlu0 0
        %1154 = vperm.xlu0 %1153, %v712
        %v1155 = vpop.permute.xlu0 %1154
        %1158 = vset.pattern.permute.xlu0 0
        %1159 = vperm.xlu0 %1158, %v713
        %v1160 = vpop.permute.xlu0 %1159
        %1163 = vset.pattern.permute.xlu0 0
        %1164 = vperm.xlu0 %1163, %v714
        %v1165 = vpop.permute.xlu0 %1164
        %1168 = vset.pattern.permute.xlu0 0
        %1169 = vperm.xlu0 %1168, %v715
        %v1170 = vpop.permute.xlu0 %1169
        %1173 = vset.pattern.permute.xlu0 0
        %1174 = vperm.xlu0 %1173, %v716
        %v1175 = vpop.permute.xlu0 %1174
        %1178 = vset.pattern.permute.xlu0 0
        %1179 = vperm.xlu0 %1178, %v717
        %v1180 = vpop.permute.xlu0 %1179
        %1183 = vset.pattern.permute.xlu0 0
        %1184 = vperm.xlu0 %1183, %v718
        %v1185 = vpop.permute.xlu0 %1184
        %1188 = vset.pattern.permute.xlu0 0
        %1189 = vperm.xlu0 %1188, %v719
        %v1190 = vpop.permute.xlu0 %1189
        %v1200 = vunpack.c.l.b16 %v1144
        %v1201 = vunpack.c.l.b16 %v1145
        %v1202 = vunpack.c.l.b16 %v1146
        %v1203 = vunpack.c.l.b16 %v1147
        %v1204 = vunpack.c.l.b16 %v1148
        %v1205 = vunpack.c.l.b16 %v1149
        %v1206 = vunpack.c.l.b16 %v1150
        %v1207 = vunpack.c.l.b16 %v1151
        %v1208 = vpack.c.b16 %v1201, %v1200
        %v1209 = vpack.c.b16 %v1203, %v1202
        %v1210 = vpack.c.b16 %v1205, %v1204
        %v1211 = vpack.c.b16 %v1207, %v1206
        %v1213 = vsel %vm1049, %v1208, 0
        %v1216 = vsel %vm1049, %v1209, 0
        %v1219 = vsel %vm1049, %v1210, 0
        %v1222 = vsel %vm1049, %v1211, 0
        %1224 = vmatpush.bf16.msra.mxu0 0
        %1225 = vmatpush.bf16.msra.mxu0 0
        %1226 = vmatpush.bf16.msra.mxu0 0
        %1227 = vmatpush.bf16.msra.mxu0 0
        %1228 = vmatpush.bf16.msra.mxu0 %v1142
        %1229 = vmatpush.bf16.msra.mxu0 %v1140
        %1230 = vmatpush.bf16.msra.mxu0 %v1138
        %1231 = vmatpush.bf16.msra.mxu0 %v1136
        %1232 = vmatmul.bf16.gmra.mxu0 %v1213
        %v1233 = vpop.f32.mrf.mxu0
        %v1234 = vadd.f32 %v1155, %v1233
        %v1235 = vpop.f32.mrf.mxu0
        %v1236 = vadd.f32 %v1160, %v1235
        %1237 = vmatmul.bf16.gmra.mxu0 %v1216
        %v1238 = vpop.f32.mrf.mxu0
        %v1239 = vadd.f32 %v1165, %v1238
        %v1240 = vpop.f32.mrf.mxu0
        %v1241 = vadd.f32 %v1170, %v1240
        %1242 = vmatmul.bf16.gmra.mxu0 %v1219
        %v1243 = vpop.f32.mrf.mxu0
        %v1244 = vadd.f32 %v1175, %v1243
        %v1245 = vpop.f32.mrf.mxu0
        %v1246 = vadd.f32 %v1180, %v1245
        %1247 = vmatmul.bf16.gmra.mxu0 %v1222
        %v1248 = vpop.f32.mrf.mxu0
        %v1249 = vadd.f32 %v1185, %v1248
        %v1250 = vpop.f32.mrf.mxu0
        %v1251 = vadd.f32 %v1190, %v1250
        %1252 = vdwg.mxu0
        %1253 = vmatpush.bf16.msra.mxu0 0
        %1254 = vmatpush.bf16.msra.mxu0 0
        %1255 = vmatpush.bf16.msra.mxu0 0
        %1256 = vmatpush.bf16.msra.mxu0 0
        %1257 = vmatpush.bf16.msra.mxu0 %v1143
        %1258 = vmatpush.bf16.msra.mxu0 %v1141
        %1259 = vmatpush.bf16.msra.mxu0 %v1139
        %1260 = vmatpush.bf16.msra.mxu0 %v1137
        %1261 = vmatmul.bf16.gmra.mxu0 %v1213
        %v1262 = vpop.f32.mrf.mxu0
        %v1263 = vadd.f32 %v1155, %v1262
        %v1264 = vpop.f32.mrf.mxu0
        %v1265 = vadd.f32 %v1160, %v1264
        %1266 = vmatmul.bf16.gmra.mxu0 %v1216
        %v1267 = vpop.f32.mrf.mxu0
        %v1268 = vadd.f32 %v1165, %v1267
        %v1269 = vpop.f32.mrf.mxu0
        %v1270 = vadd.f32 %v1170, %v1269
        %1271 = vmatmul.bf16.gmra.mxu0 %v1219
        %v1272 = vpop.f32.mrf.mxu0
        %v1273 = vadd.f32 %v1175, %v1272
        %v1274 = vpop.f32.mrf.mxu0
        %v1275 = vadd.f32 %v1180, %v1274
        %1276 = vmatmul.bf16.gmra.mxu0 %v1222
        %v1277 = vpop.f32.mrf.mxu0
        %v1278 = vadd.f32 %v1185, %v1277
        %v1279 = vpop.f32.mrf.mxu0
        %v1280 = vadd.f32 %v1190, %v1279
        %1281 = vdwg.mxu0
        %v1282 = vunpack.c.l.bf16 %v933
        %v1283 = vunpack.c.h.bf16 %v933
        %v1284 = vunpack.c.l.bf16 %v934
        %v1285 = vunpack.c.h.bf16 %v934
        %v1286 = vunpack.c.l.bf16 %v935
        %v1287 = vunpack.c.h.bf16 %v935
        %v1288 = vunpack.c.l.bf16 %v936
        %v1289 = vunpack.c.h.bf16 %v936
        %v1290 = vunpack.c.l.bf16 %v937
        %v1291 = vunpack.c.h.bf16 %v937
        %v1292 = vunpack.c.l.bf16 %v938
        %v1293 = vunpack.c.h.bf16 %v938
        %v1294 = vunpack.c.l.bf16 %v939
        %v1295 = vunpack.c.h.bf16 %v939
        %v1296 = vunpack.c.l.bf16 %v940
        %v1297 = vunpack.c.h.bf16 %v940
        %v1298 = vadd.f32 %v1234, %v1282
        %v1299 = vadd.f32 %v1263, %v1283
        %v1300 = vadd.f32 %v1236, %v1284
        %v1301 = vadd.f32 %v1265, %v1285
        %v1302 = vadd.f32 %v1239, %v1286
        %v1303 = vadd.f32 %v1268, %v1287
        %v1304 = vadd.f32 %v1241, %v1288
        %v1305 = vadd.f32 %v1270, %v1289
        %v1306 = vadd.f32 %v1244, %v1290
        %v1307 = vadd.f32 %v1273, %v1291
        %v1308 = vadd.f32 %v1246, %v1292
        %v1309 = vadd.f32 %v1275, %v1293
        %v1310 = vadd.f32 %v1249, %v1294
        %v1311 = vadd.f32 %v1278, %v1295
        %v1312 = vadd.f32 %v1251, %v1296
        %v1313 = vadd.f32 %v1280, %v1297
        %v1314 = vmax.f32 %v1298, 0.0
        %v1315 = vmax.f32 %v1299, 0.0
        %v1316 = vmax.f32 %v1300, 0.0
        %v1317 = vmax.f32 %v1301, 0.0
        %v1318 = vmax.f32 %v1302, 0.0
        %v1319 = vmax.f32 %v1303, 0.0
        %v1320 = vmax.f32 %v1304, 0.0
        %v1321 = vmax.f32 %v1305, 0.0
        %v1322 = vmax.f32 %v1306, 0.0
        %v1323 = vmax.f32 %v1307, 0.0
        %v1324 = vmax.f32 %v1308, 0.0
        %v1325 = vmax.f32 %v1309, 0.0
        %v1326 = vmax.f32 %v1310, 0.0
        %v1327 = vmax.f32 %v1311, 0.0
        %v1328 = vmax.f32 %v1312, 0.0
        %v1329 = vmax.f32 %v1313, 0.0
        %s1330 = smul.u32 %s23, 256
        %v1331 = vlaneseq
        %v1332 = vand.u32 %v1331, 127
        %v1333 = vadd.s32 %v1332, 128
        %v1334 = vstv %s1330
        %v1335 = vadd.s32 %v1334, %v1332
        %v1336 = vadd.s32 %v1334, %v1333
        %vm1337 = vcmp.lt.s32.totalorder %v1335, 784
        %vm1338 = vcmp.lt.s32.totalorder %v1336, 784
        %v1339 = vsel %vm1337, 1, 0
        %v1340 = vsel %vm1338, 1, 0
        %vm1341 = vcmp.eq.s32.totalorder %v1339, 1
        %vm1342 = vcmp.eq.s32.totalorder %v1340, 1
        %v1343 = vsel %vm1341, %v1314, 0.0
        %v1344 = vsel %vm1342, %v1315, 0.0
        %v1345 = vsel %vm1341, %v1316, 0.0
        %v1346 = vsel %vm1342, %v1317, 0.0
        %v1347 = vsel %vm1341, %v1318, 0.0
        %v1348 = vsel %vm1342, %v1319, 0.0
        %v1349 = vsel %vm1341, %v1320, 0.0
        %v1350 = vsel %vm1342, %v1321, 0.0
        %v1351 = vsel %vm1341, %v1322, 0.0
        %v1352 = vsel %vm1342, %v1323, 0.0
        %v1353 = vsel %vm1341, %v1324, 0.0
        %v1354 = vsel %vm1342, %v1325, 0.0
        %v1355 = vsel %vm1341, %v1326, 0.0
        %v1356 = vsel %vm1342, %v1327, 0.0
        %v1357 = vsel %vm1341, %v1328, 0.0
        %v1358 = vsel %vm1342, %v1329, 0.0
        %v1359 = vld [vmem:[#allocation2] sm:$0xff]
        %v1360 = vld [vmem:[#allocation2 + $0x8] sm:$0xff]
        %v1361 = vld [vmem:[#allocation2 + $0x10] sm:$0xff]
        %v1362 = vld [vmem:[#allocation2 + $0x18] sm:$0xff]
        %v1363 = vld [vmem:[#allocation2 + $0x20] sm:$0xff]
        %v1364 = vld [vmem:[#allocation2 + $0x28] sm:$0xff]
        %v1365 = vld [vmem:[#allocation2 + $0x30] sm:$0xff]
        %v1366 = vld [vmem:[#allocation2 + $0x38] sm:$0xff]
        %v1367 = vadd.f32 %v1359, %v1343
        %v1368 = vadd.f32 %v1360, %v1345
        %v1369 = vadd.f32 %v1361, %v1347
        %v1370 = vadd.f32 %v1362, %v1349
        %v1371 = vadd.f32 %v1363, %v1351
        %v1372 = vadd.f32 %v1364, %v1353
        %v1373 = vadd.f32 %v1365, %v1355
        %v1374 = vadd.f32 %v1366, %v1357
        %v1375 = vadd.f32 %v1367, %v1344
        %v1376 = vadd.f32 %v1368, %v1346
        %v1377 = vadd.f32 %v1369, %v1348
        %v1378 = vadd.f32 %v1370, %v1350
        %v1379 = vadd.f32 %v1371, %v1352
        %v1380 = vadd.f32 %v1372, %v1354
        %v1381 = vadd.f32 %v1373, %v1356
        %v1382 = vadd.f32 %v1374, %v1358
        %1383 = vst [vmem:[#allocation2] sm:$0xff] %v1375
        %1384 = vst [vmem:[#allocation2 + $0x8] sm:$0xff] %v1376
        %1385 = vst [vmem:[#allocation2 + $0x10] sm:$0xff] %v1377
        %1386 = vst [vmem:[#allocation2 + $0x18] sm:$0xff] %v1378
        %1387 = vst [vmem:[#allocation2 + $0x20] sm:$0xff] %v1379
        %1388 = vst [vmem:[#allocation2 + $0x28] sm:$0xff] %v1380
        %1389 = vst [vmem:[#allocation2 + $0x30] sm:$0xff] %v1381
        %1390 = vst [vmem:[#allocation2 + $0x38] sm:$0xff] %v1382
        %p1391 = scmp.eq.s32.totalorder %s23, 3
        // Predicated region
        $region119: #{global_predictor_forward.1} parent=109 // pred_check
          %p1392 = pneg %p1391
        $region120: #{global_predictor_forward.1} parent=109 // pred_check_branch
          %1394 = sbr.rel (%p1392) target = $region122
        $region121: #{global_predictor_forward.1} parent=109 // pred_region
          %v1395 = vld [vmem:[#allocation2] sm:$0xff]
          %v1396 = vld [vmem:[#allocation2 + $0x8] sm:$0xff]
          %v1397 = vld [vmem:[#allocation2 + $0x10] sm:$0xff]
          %v1398 = vld [vmem:[#allocation2 + $0x18] sm:$0xff]
          %v1399 = vld [vmem:[#allocation2 + $0x20] sm:$0xff]
          %v1400 = vld [vmem:[#allocation2 + $0x28] sm:$0xff]
          %v1401 = vld [vmem:[#allocation2 + $0x30] sm:$0xff]
          %v1402 = vld [vmem:[#allocation2 + $0x38] sm:$0xff]
          %1403 = vadd.xlane.f32.xlu0 %v1395
          %v1404 = vpop.xlane.xlu0 %1403
          %1405 = vadd.xlane.f32.xlu0 %v1396
          %v1406 = vpop.xlane.xlu0 %1405
          %1407 = vadd.xlane.f32.xlu0 %v1397
          %v1408 = vpop.xlane.xlu0 %1407
          %1409 = vadd.xlane.f32.xlu0 %v1398
          %v1410 = vpop.xlane.xlu0 %1409
          %1411 = vadd.xlane.f32.xlu0 %v1399
          %v1412 = vpop.xlane.xlu0 %1411
          %1413 = vadd.xlane.f32.xlu0 %v1400
          %v1414 = vpop.xlane.xlu0 %1413
          %1415 = vadd.xlane.f32.xlu0 %v1401
          %v1416 = vpop.xlane.xlu0 %1415
          %1417 = vadd.xlane.f32.xlu0 %v1402
          %v1418 = vpop.xlane.xlu0 %1417
          %v1419 = vmul.f32 %v1404, 0.0012755102
          %v1420 = vmul.f32 %v1406, 0.0012755102
          %v1421 = vmul.f32 %v1408, 0.0012755102
          %v1422 = vmul.f32 %v1410, 0.0012755102
          %v1423 = vmul.f32 %v1412, 0.0012755102
          %v1424 = vmul.f32 %v1414, 0.0012755102
          %v1425 = vmul.f32 %v1416, 0.0012755102
          %v1426 = vmul.f32 %v1418, 0.0012755102
          %v1427 = vld [vmem:[%s5] sm:$0xff]
          %v1428 = vld [vmem:[%s5 + $0x8] sm:$0xff]
          %v1429 = vld [vmem:[%s5 + $0x10] sm:$0xff]
          %v1430 = vld [vmem:[%s5 + $0x18] sm:$0xff]
          %v1431 = vld [vmem:[%s5 + $0x20] sm:$0xff]
          %v1432 = vld [vmem:[%s5 + $0x28] sm:$0xff]
          %v1433 = vld [vmem:[%s5 + $0x30] sm:$0xff]
          %v1434 = vld [vmem:[%s5 + $0x38] sm:$0xff]
          %v1435 = vld [vmem:[%s5 + $0x40] sm:$0xff]
          %v1436 = vld [vmem:[%s5 + $0x48] sm:$0xff]
          %v1437 = vld [vmem:[%s5 + $0x50] sm:$0xff]
          %v1438 = vld [vmem:[%s5 + $0x58] sm:$0xff]
          %v1439 = vld [vmem:[%s5 + $0x60] sm:$0xff]
          %v1440 = vld [vmem:[%s5 + $0x68] sm:$0xff]
          %v1441 = vld [vmem:[%s5 + $0x70] sm:$0xff]
          %v1442 = vld [vmem:[%s5 + $0x78] sm:$0xff]
          %v1443 = vmul.f32 %v1419, %v1427
          %v1444 = vmul.f32 %v1419, %v1428
          %v1445 = vmul.f32 %v1420, %v1429
          %v1446 = vmul.f32 %v1420, %v1430
          %v1447 = vmul.f32 %v1421, %v1431
          %v1448 = vmul.f32 %v1421, %v1432
          %v1449 = vmul.f32 %v1422, %v1433
          %v1450 = vmul.f32 %v1422, %v1434
          %v1451 = vmul.f32 %v1423, %v1435
          %v1452 = vmul.f32 %v1423, %v1436
          %v1453 = vmul.f32 %v1424, %v1437
          %v1454 = vmul.f32 %v1424, %v1438
          %v1455 = vmul.f32 %v1425, %v1439
          %v1456 = vmul.f32 %v1425, %v1440
          %v1457 = vmul.f32 %v1426, %v1441
          %v1458 = vmul.f32 %v1426, %v1442
          %v1459 = vadd.f32 %v1443, %v1445
          %v1460 = vadd.f32 %v1459, %v1447
          %v1461 = vadd.f32 %v1460, %v1449
          %v1462 = vadd.f32 %v1461, %v1451
          %v1463 = vadd.f32 %v1462, %v1453
          %v1464 = vadd.f32 %v1463, %v1455
          %v1465 = vadd.f32 %v1464, %v1457
          %v1466 = vrot.slane %v1465, 4
          %v1467 = vadd.f32 %v1465, %v1466
          %v1468 = vrot.slane %v1467, 2
          %v1469 = vadd.f32 %v1467, %v1468
          %v1470 = vrot.slane %v1469, 1
          %v1471 = vadd.f32 %v1469, %v1470
          %v1472 = vadd.f32 %v1444, %v1446
          %v1473 = vadd.f32 %v1472, %v1448
          %v1474 = vadd.f32 %v1473, %v1450
          %v1475 = vadd.f32 %v1474, %v1452
          %v1476 = vadd.f32 %v1475, %v1454
          %v1477 = vadd.f32 %v1476, %v1456
          %v1478 = vadd.f32 %v1477, %v1458
          %v1479 = vrot.slane %v1478, 4
          %v1480 = vadd.f32 %v1478, %v1479
          %v1481 = vrot.slane %v1480, 2
          %v1482 = vadd.f32 %v1480, %v1481
          %v1483 = vrot.slane %v1482, 1
          %v1484 = vadd.f32 %v1482, %v1483
          %v1485 = vld [vmem:[%s6] sm:$0x3]
          %v1487 = vperm.slane %v1485, 0
          %v1488 = vperm.slane %v1485, 1
          %v1491 = vadd.f32 %v1471, %v1487
          %v1492 = vadd.f32 %v1484, %v1488
          %v1495 = vrot.slane %v1492, 7
          %vm1496 = vcmask 1040384
          %v1497 = vsel %vm1496, %v1491, %v1495
          %v1499 = vlaneseq
          %vm1500 = vcmp.ge.s32.totalorder %v1499, 0
          %vm1501 = vcmp.lt.s32.totalorder %v1499, 256
          %vm1502 = vmand %vm1500, %vm1501
          %1503 = vst.msk [vmem:[%s672] sm:$0x3] %vm1502, %v1497
        $region122: #{global_predictor_forward.1} parent=109 // pred_fallthru
          _
        %p1504 = scmp.lt.s32.totalorder %s22, 1
        %s1505 = scalar_select %p1504, %s22, 1
        %s1506 = smul.addr %s1505, 2
        %s1507 = scalar_lea.vmem %s7, %s1506
        // Predicated region
        $region123: #{global_predictor_forward.1} parent=109 // pred_check
          %p1508 = pneg %p202
        $region124: #{global_predictor_forward.1} parent=109 // pred_check_branch
          %1510 = sbr.rel (%p1508) target = $region126
        $region125: #{global_predictor_forward.1} parent=109 // pred_region
          _
        $region126: #{global_predictor_forward.1} parent=109 // pred_fallthru
          _
      $region110: #{global_predictor_forward.1} parent=5 // pred_fallthru
        _
      %p1511 = scmp.le.s32.totalorder 2, %s13
      // Predicated region
      $region127: #{global_predictor_forward.1} parent=5 // pred_check
        %p1512 = pneg %p1511
      $region128: #{global_predictor_forward.1} parent=5 // pred_check_branch
        %1514 = sbr.rel (%p1512) target = $region130
      $region129: #{global_predictor_forward.1} parent=5 // pred_region
        %s1515 = ssub.s32 %s13, 2
        // Predicated region
        $region131: #{global_predictor_forward.1} parent=129 // pred_check
          %p1516 = pneg %p208
        $region132: #{global_predictor_forward.1} parent=129 // pred_check_branch
          %1518 = sbr.rel (%p1516) target = $region134
        $region133: #{global_predictor_forward.1} parent=129 // pred_region
          %p1519 = scmp.lt.s32.totalorder %s24, 1
          %s1520 = scalar_select %p1519, %s24, 1
          %s1521 = smul.addr %s1520, 2
          %s1522 = scalar_lea.vmem %s7, %s1521
        $region134: #{global_predictor_forward.1} parent=129 // pred_fallthru
          _
      $region130: #{global_predictor_forward.1} parent=5 // pred_fallthru
        _
    $region6: #{global_predictor_forward.1} parent=1 // loop_footer
      %s17 = sadd.s32 1, %s13
    $region7: #{global_predictor_forward.1} parent=1 // loop_footer_branch
      %12 = sbr.rel target = $region3
    $region8: #{global_predictor_forward.1} parent=1 // loop_exit
      _

</llo_original>
